<compile_context>
chip_gen: v7x
topology: tpu7x:2x2x1
jax: 0.10.0
libtpu: 0.0.40
codegen_flags: <defaults>
</compile_context>

<pallas_src>
import jax
import jax.numpy as jnp
from jax.experimental import pallas as pl
from jax.experimental.pallas import tpu as pltpu

# ----------------------------- config (small, BERT-like) -----------------------------
BATCH = 2
SEQ = 8
HIDDEN = 32
N_HEADS = 2
HEAD_DIM = HIDDEN // N_HEADS
FFN = 64
N_LAYERS = 2
VOCAB = 100
MAX_POS = 16
TYPE_VOCAB = 2
NUM_CLASSES = 2
LN_EPS = 1e-12
CLS_PAD = 128            # lane-dense padding for the classifier output


# ----------------------------- small in-kernel helpers -----------------------------
def _ln(x, g, b):
    mu = jnp.mean(x, axis=-1, keepdims=True)
    var = jnp.mean((x - mu) ** 2, axis=-1, keepdims=True)
    return (x - mu) * jax.lax.rsqrt(var + LN_EPS) * g + b


def _gelu_tanh(x):
    # tanh-approximate GELU -> routed to the EUP (vs erf polynomial on the VPU)
    c = jnp.float32(0.7978845608028654)      # sqrt(2/pi)
    return 0.5 * x * (1.0 + jnp.tanh(c * (x + 0.044715 * x * x * x)))


# ----------------------------- kernel 1: embedding LayerNorm -----------------------------
def _emb_ln_kernel(x_ref, g_ref, b_ref, o_ref):
    x = x_ref[...].astype(jnp.float32)
    o_ref[...] = _ln(x, g_ref[...], b_ref[...]).astype(o_ref.dtype)


def emb_layernorm(x, gamma, beta):
    M, H = x.shape
    return pl.pallas_call(
        _emb_ln_kernel,
        out_shape=jax.ShapeDtypeStruct((M, H), jnp.float32),
        grid=(1,),
        in_specs=[
            pl.BlockSpec((M, H), lambda i: (0, 0)),
            pl.BlockSpec((1, H), lambda i: (0, 0)),
            pl.BlockSpec((1, H), lambda i: (0, 0)),
        ],
        out_specs=pl.BlockSpec((M, H), lambda i: (0, 0)),
    )(x, gamma.reshape(1, H), beta.reshape(1, H))


# ----------------------------- kernel 2: fused encoder layer (grid over layers) -----------------------------
def _encoder_layer_kernel(h0_ref, bias_ref,
                          wqkv_ref, bqkv_ref, wo_ref, bo_ref,
                          ln1g_ref, ln1b_ref,
                          w1_ref, b1_ref, w2_ref, b2_ref,
                          ln2g_ref, ln2b_ref,
                          h_ref):
    layer = pl.program_id(0)

    # carry: the hidden activation lives in the (resident) output VMEM block
    @pl.when(layer == 0)
    def _():
        h_ref[...] = h0_ref[...]

    h = h_ref[...].astype(jnp.float32)                       # (B*S, H)
    bias_all = bias_ref[...].astype(jnp.float32)             # (B, S) additive key bias

    # ---- fused Q|K|V projection: one bf16 matmul, f32 accumulation ----
    qkv = jnp.dot(h.astype(jnp.bfloat16), wqkv_ref[0],
                  preferred_element_type=jnp.float32) + bqkv_ref[0]      # (B*S, 3H)
    q = qkv[:, 0 * HIDDEN:1 * HIDDEN]
    k = qkv[:, 1 * HIDDEN:2 * HIDDEN]
    v = qkv[:, 2 * HIDDEN:3 * HIDDEN]

    # ---- multi-head attention, fully in VMEM (static loops over batch/heads) ----
    scale = 1.0 / float(HEAD_DIM) ** 0.5
    ctx_rows = []
    for b in range(BATCH):
        qb = q[b * SEQ:(b + 1) * SEQ, :]
        kb = k[b * SEQ:(b + 1) * SEQ, :]
        vb = v[b * SEQ:(b + 1) * SEQ, :]
        mb = bias_all[b:b + 1, :]                            # (1, S)
        heads = []
        for hh in range(N_HEADS):
            sl = slice(hh * HEAD_DIM, (hh + 1) * HEAD_DIM)
            qh = qb[:, sl]
            kh = kb[:, sl]
            vh = vb[:, sl]
            sc = jnp.dot(qh, kh.T, preferred_element_type=jnp.float32) * scale + mb
            m = jnp.max(sc, axis=-1, keepdims=True)
            e = jnp.exp(sc - m)
            p = e * pl.reciprocal(jnp.sum(e, axis=-1, keepdims=True), approx=True)
            heads.append(jnp.dot(p, vh, preferred_element_type=jnp.float32))
        ctx_rows.append(jnp.concatenate(heads, axis=-1))     # (S, H)
    ctx = jnp.concatenate(ctx_rows, axis=0)                  # (B*S, H)

    # ---- attention output projection + residual + LayerNorm ----
    attn = jnp.dot(ctx.astype(jnp.bfloat16), wo_ref[0],
                   preferred_element_type=jnp.float32) + bo_ref[0]
    h1 = _ln(attn + h, ln1g_ref[0], ln1b_ref[0])

    # ---- FFN (GELU) + residual + LayerNorm ----
    f = jnp.dot(h1.astype(jnp.bfloat16), w1_ref[0],
                preferred_element_type=jnp.float32) + b1_ref[0]
    f = _gelu_tanh(f)
    f2 = jnp.dot(f.astype(jnp.bfloat16), w2_ref[0],
                 preferred_element_type=jnp.float32) + b2_ref[0]
    h_ref[...] = _ln(f2 + h1, ln2g_ref[0], ln2b_ref[0]).astype(h_ref.dtype)


def encoder_stack(h0, mask_bias, stacked):
    BS = BATCH * SEQ
    H = HIDDEN

    def wmap(l):
        return (l, 0, 0)

    in_specs = [
        pl.BlockSpec((BS, H), lambda l: (0, 0)),             # h0 (initial hidden)
        pl.BlockSpec((BATCH, SEQ), lambda l: (0, 0)),        # additive mask bias
        pl.BlockSpec((1, H, 3 * H), wmap),                   # wqkv (bf16)
        pl.BlockSpec((1, 1, 3 * H), wmap),                   # bqkv
        pl.BlockSpec((1, H, H), wmap),                       # wo (bf16)
        pl.BlockSpec((1, 1, H), wmap),                       # bo
        pl.BlockSpec((1, 1, H), wmap),                       # ln1_g
        pl.BlockSpec((1, 1, H), wmap),                       # ln1_b
        pl.BlockSpec((1, H, FFN), wmap),                     # w1 (bf16)
        pl.BlockSpec((1, 1, FFN), wmap),                     # b1
        pl.BlockSpec((1, FFN, H), wmap),                     # w2 (bf16)
        pl.BlockSpec((1, 1, H), wmap),                       # b2
        pl.BlockSpec((1, 1, H), wmap),                       # ln2_g
        pl.BlockSpec((1, 1, H), wmap),                       # ln2_b
    ]
    return pl.pallas_call(
        _encoder_layer_kernel,
        out_shape=jax.ShapeDtypeStruct((BS, H), jnp.float32),
        grid=(N_LAYERS,),
        in_specs=in_specs,
        out_specs=pl.BlockSpec((BS, H), lambda l: (0, 0)),
        compiler_params=pltpu.CompilerParams(
            dimension_semantics=("arbitrary",)),             # layers are a sequential carry
    )(h0, mask_bias, *stacked)


# ----------------------------- kernel 3: pooler + dropout(eval) + classifier + ReLU -----------------------------
def _head_kernel(cls_ref, pw_ref, pb_ref, cw_ref, cb_ref, o_ref):
    x = cls_ref[...].astype(jnp.float32)                     # (B, H)
    pooled = jnp.tanh(
        jnp.dot(x.astype(jnp.bfloat16), pw_ref[...],
                preferred_element_type=jnp.float32) + pb_ref[...])
    # dropout(p=0.5): identity in eval/validation mode
    # TODO(synk): training-mode dropout (pltpu.prng_*) omitted; validation forward uses eval mode.
    logits = jnp.dot(pooled.astype(jnp.bfloat16), cw_ref[...],
                     preferred_element_type=jnp.float32) + cb_ref[...]
    o_ref[...] = jnp.maximum(logits, 0.0).astype(o_ref.dtype)


def pooler_classifier_head(cls_tok, pool_w, pool_b, cls_w, cls_b):
    B, H = cls_tok.shape
    # pad classifier weights to a lane-dense 128-wide output (padding cols -> 0)
    cw = jnp.zeros((H, CLS_PAD), jnp.bfloat16).at[:, :NUM_CLASSES].set(
        cls_w.astype(jnp.bfloat16))
    cb = jnp.zeros((1, CLS_PAD), jnp.float32).at[:, :NUM_CLASSES].set(
        cls_b.reshape(1, NUM_CLASSES))
    out = pl.pallas_call(
        _head_kernel,
        out_shape=jax.ShapeDtypeStruct((B, CLS_PAD), jnp.float32),
        grid=(1,),
        in_specs=[
            pl.BlockSpec((B, H), lambda i: (0, 0)),
            pl.BlockSpec((H, H), lambda i: (0, 0)),
            pl.BlockSpec((1, H), lambda i: (0, 0)),
            pl.BlockSpec((H, CLS_PAD), lambda i: (0, 0)),
            pl.BlockSpec((1, CLS_PAD), lambda i: (0, 0)),
        ],
        out_specs=pl.BlockSpec((B, CLS_PAD), lambda i: (0, 0)),
    )(cls_tok, pool_w.astype(jnp.bfloat16), pool_b.reshape(1, H), cw, cb)
    return out[:, :NUM_CLASSES]


# ----------------------------- parameters -----------------------------
def init_params(key):
    scale = 0.02
    n_keys = 6 + N_LAYERS * 16
    keys = iter(jax.random.split(key, n_keys))

    def nrm(shape):
        return scale * jax.random.normal(next(keys), shape, dtype=jnp.float32)

    params = {
        "word_emb": nrm((VOCAB, HIDDEN)),
        "pos_emb": nrm((MAX_POS, HIDDEN)),
        "type_emb": nrm((TYPE_VOCAB, HIDDEN)),
        "emb_ln_g": jnp.ones((HIDDEN,), jnp.float32),
        "emb_ln_b": jnp.zeros((HIDDEN,), jnp.float32),
        "layers": [],
        "pool_w": nrm((HIDDEN, HIDDEN)),
        "pool_b": jnp.zeros((HIDDEN,), jnp.float32),
        "cls_w": nrm((HIDDEN, NUM_CLASSES)),
        "cls_b": jnp.zeros((NUM_CLASSES,), jnp.float32),
    }
    for _ in range(N_LAYERS):
        params["layers"].append({
            "wq": nrm((HIDDEN, HIDDEN)), "bq": jnp.zeros((HIDDEN,), jnp.float32),
            "wk": nrm((HIDDEN, HIDDEN)), "bk": jnp.zeros((HIDDEN,), jnp.float32),
            "wv": nrm((HIDDEN, HIDDEN)), "bv": jnp.zeros((HIDDEN,), jnp.float32),
            "wo": nrm((HIDDEN, HIDDEN)), "bo": jnp.zeros((HIDDEN,), jnp.float32),
            "ln1_g": jnp.ones((HIDDEN,), jnp.float32),
            "ln1_b": jnp.zeros((HIDDEN,), jnp.float32),
            "w1": nrm((HIDDEN, FFN)), "b1": jnp.zeros((FFN,), jnp.float32),
            "w2": nrm((FFN, HIDDEN)), "b2": jnp.zeros((HIDDEN,), jnp.float32),
            "ln2_g": jnp.ones((HIDDEN,), jnp.float32),
            "ln2_b": jnp.zeros((HIDDEN,), jnp.float32),
        })
    return params


def stack_layer_params(layers):
    """Stack per-layer weights on a leading layer axis (QKV fused); matmul weights -> bf16."""
    def st(fn):
        return jnp.stack([fn(l) for l in layers], axis=0)

    wqkv = st(lambda l: jnp.concatenate([l["wq"], l["wk"], l["wv"]], axis=1)
              ).astype(jnp.bfloat16)                                       # (L, H, 3H)
    bqkv = st(lambda l: jnp.concatenate([l["bq"], l["bk"], l["bv"]]).reshape(1, -1))
    wo = st(lambda l: l["wo"]).astype(jnp.bfloat16)                        # (L, H, H)
    bo = st(lambda l: l["bo"].reshape(1, -1))
    ln1g = st(lambda l: l["ln1_g"].reshape(1, -1))
    ln1b = st(lambda l: l["ln1_b"].reshape(1, -1))
    w1 = st(lambda l: l["w1"]).astype(jnp.bfloat16)                        # (L, H, FFN)
    b1 = st(lambda l: l["b1"].reshape(1, -1))
    w2 = st(lambda l: l["w2"]).astype(jnp.bfloat16)                        # (L, FFN, H)
    b2 = st(lambda l: l["b2"].reshape(1, -1))
    ln2g = st(lambda l: l["ln2_g"].reshape(1, -1))
    ln2b = st(lambda l: l["ln2_b"].reshape(1, -1))
    return (wqkv, bqkv, wo, bo, ln1g, ln1b, w1, b1, w2, b2, ln2g, ln2b)


# ----------------------------- forward pass -----------------------------
def bert_classifier_forward(params, input_ids, attention_mask, token_type_ids):
    B, S = input_ids.shape
    H = HIDDEN

    # --- embeddings (gather = plain-JAX glue), then Pallas layernorm ---
    we = jnp.take(params["word_emb"], input_ids, axis=0)                  # (B,S,H)
    pe = params["pos_emb"][:S][None, :, :]                                # (1,S,H)
    te = jnp.take(params["type_emb"], token_type_ids, axis=0)             # (B,S,H)
    emb = (we + pe + te).reshape(B * S, H)
    h = emb_layernorm(emb, params["emb_ln_g"], params["emb_ln_b"])

    # additive key-position mask bias, precomputed once
    mask_bias = (1.0 - attention_mask.astype(jnp.float32)) * (-1e9)       # (B,S)

    # --- fused encoder stack: one pallas_call, layers as the grid axis ---
    stacked = stack_layer_params(params["layers"])
    h = encoder_stack(h, mask_bias, stacked)                              # (B*S,H)

    # --- pooler + dropout(eval) + classifier + ReLU (one fused call) ---
    cls_tok = h.reshape(B, S, H)[:, 0, :]                                 # (B,H)
    logits = pooler_classifier_head(cls_tok, params["pool_w"], params["pool_b"],
                                    params["cls_w"], params["cls_b"])
    return logits                                                          # (B,NUM_CLASSES)


# ----------------------------- main -----------------------------
if __name__ == "__main__":
    key = jax.random.PRNGKey(0)
    k_param, k_ids, k_types = jax.random.split(key, 3)

    params = init_params(k_param)

    input_ids = jax.random.randint(k_ids, (BATCH, SEQ), 0, VOCAB, dtype=jnp.int32)
    token_type_ids = jax.random.randint(k_types, (BATCH, SEQ), 0, TYPE_VOCAB,
                                        dtype=jnp.int32)
    # mask: first sequence fully valid, second has last 3 tokens padded
    attention_mask = jnp.array(
        [[1] * SEQ, [1] * (SEQ - 3) + [0] * 3], dtype=jnp.int32)

    fwd = jax.jit(bert_classifier_forward)
    out = fwd(params, input_ids, attention_mask, token_type_ids)
    out = jax.block_until_ready(out)

    assert out.shape == (BATCH, NUM_CLASSES)
    assert bool(jnp.all(out >= 0.0))  # ReLU output is non-negative
    print("KERNEL_OK")
</pallas_src>

<mosaic_0001>
module attributes {stable_mosaic.version = 11 : i64} {
  func.func @_emb_ln_kernel(%arg0: i32, %arg1: memref<16x32xf32, #tpu.memory_space<vmem>>, %arg2: memref<1x32xf32, #tpu.memory_space<vmem>>, %arg3: memref<1x32xf32, #tpu.memory_space<vmem>>, %arg4: memref<16x32xf32, #tpu.memory_space<vmem>>) attributes {dimension_semantics = [#tpu.dimension_semantics<arbitrary>], iteration_bounds = array<i64: 1>, scalar_prefetch = 0 : i64, scratch_operands = 0 : i64, tpu.core_type = #tpu.core_type<tc>, window_params = [{pipeline_mode = #tpu.pipeline_mode<synchronous>, transform_indices = @transform_0, window_bounds = array<i64: 16, 32>}, {pipeline_mode = #tpu.pipeline_mode<synchronous>, transform_indices = @transform_1, window_bounds = array<i64: 1, 32>}, {pipeline_mode = #tpu.pipeline_mode<synchronous>, transform_indices = @transform_2, window_bounds = array<i64: 1, 32>}, {pipeline_mode = #tpu.pipeline_mode<synchronous>, transform_indices = @transform_3, window_bounds = array<i64: 16, 32>}]} {
    %c0 = arith.constant 0 : index
    %c0_0 = arith.constant 0 : index
    %0 = vector.load %arg1[%c0, %c0_0] : memref<16x32xf32, #tpu.memory_space<vmem>>, vector<16x32xf32>
    %c0_1 = arith.constant 0 : index
    %c0_2 = arith.constant 0 : index
    %1 = vector.load %arg2[%c0_1, %c0_2] : memref<1x32xf32, #tpu.memory_space<vmem>>, vector<1x32xf32>
    %c0_3 = arith.constant 0 : index
    %c0_4 = arith.constant 0 : index
    %2 = vector.load %arg3[%c0_3, %c0_4] : memref<1x32xf32, #tpu.memory_space<vmem>>, vector<1x32xf32>
    %cst = arith.constant dense<0.000000e+00> : vector<16xf32>
    %3 = vector.multi_reduction <add>, %0, %cst [1] : vector<16x32xf32> to vector<16xf32>
    %4 = vector.shape_cast %3 : vector<16xf32> to vector<16x1xf32>
    %cst_5 = arith.constant 3.200000e+01 : f32
    %5 = vector.broadcast %cst_5 : f32 to vector<16x1xf32>
    %6 = arith.divf %4, %5 : vector<16x1xf32>
    %7 = vector.broadcast %6 : vector<16x1xf32> to vector<16x32xf32>
    %8 = arith.subf %0, %7 : vector<16x32xf32>
    %9 = arith.mulf %8, %8 : vector<16x32xf32>
    %cst_6 = arith.constant dense<0.000000e+00> : vector<16xf32>
    %10 = vector.multi_reduction <add>, %9, %cst_6 [1] : vector<16x32xf32> to vector<16xf32>
    %11 = vector.shape_cast %10 : vector<16xf32> to vector<16x1xf32>
    %cst_7 = arith.constant 3.200000e+01 : f32
    %12 = vector.broadcast %cst_7 : f32 to vector<16x1xf32>
    %13 = arith.divf %11, %12 : vector<16x1xf32>
    %14 = vector.broadcast %6 : vector<16x1xf32> to vector<16x32xf32>
    %15 = arith.subf %0, %14 : vector<16x32xf32>
    %cst_8 = arith.constant 9.99999996E-13 : f32
    %16 = vector.broadcast %cst_8 : f32 to vector<16x1xf32>
    %17 = arith.addf %13, %16 : vector<16x1xf32>
    %18 = math.rsqrt %17 : vector<16x1xf32>
    %19 = vector.broadcast %18 : vector<16x1xf32> to vector<16x32xf32>
    %20 = arith.mulf %15, %19 : vector<16x32xf32>
    %21 = vector.broadcast %1 : vector<1x32xf32> to vector<16x32xf32>
    %22 = arith.mulf %20, %21 : vector<16x32xf32>
    %23 = vector.broadcast %2 : vector<1x32xf32> to vector<16x32xf32>
    %24 = arith.addf %22, %23 : vector<16x32xf32>
    %c0_9 = arith.constant 0 : index
    %c0_10 = arith.constant 0 : index
    %25 = vector.load %arg4[%c0_9, %c0_10] : memref<16x32xf32, #tpu.memory_space<vmem>>, vector<16x32xf32>
    tpu.vector_store %arg4[%c0_9, %c0_10], %24 {strides = array<i32>} : memref<16x32xf32, #tpu.memory_space<vmem>>, vector<16x32xf32>,
    return
  }
  func.func @transform_0(%arg0: i32) -> (i32, i32) {
    %c0_i32 = arith.constant 0 : i32
    %c0_i32_0 = arith.constant 0 : i32
    %c0_i32_1 = arith.constant 0 : i32
    return %c0_i32, %c0_i32_0 : i32, i32
  }
  func.func @transform_1(%arg0: i32) -> (i32, i32) {
    %c0_i32 = arith.constant 0 : i32
    %c0_i32_0 = arith.constant 0 : i32
    %c0_i32_1 = arith.constant 0 : i32
    return %c0_i32, %c0_i32_0 : i32, i32
  }
  func.func @transform_2(%arg0: i32) -> (i32, i32) {
    %c0_i32 = arith.constant 0 : i32
    %c0_i32_0 = arith.constant 0 : i32
    %c0_i32_1 = arith.constant 0 : i32
    return %c0_i32, %c0_i32_0 : i32, i32
  }
  func.func @transform_3(%arg0: i32) -> (i32, i32) {
    %c0_i32 = arith.constant 0 : i32
    %c0_i32_0 = arith.constant 0 : i32
    %c0_i32_1 = arith.constant 0 : i32
    return %c0_i32, %c0_i32_0 : i32, i32
  }
}

module attributes {stable_mosaic.version = 11 : i64} {
  func.func @_encoder_layer_kernel(%arg0: i32, %arg1: memref<16x32xf32, #tpu.memory_space<vmem>>, %arg2: memref<2x8xf32, #tpu.memory_space<vmem>>, %arg3: memref<1x32x96xbf16, #tpu.memory_space<vmem>>, %arg4: memref<1x1x96xf32, #tpu.memory_space<vmem>>, %arg5: memref<1x32x32xbf16, #tpu.memory_space<vmem>>, %arg6: memref<1x1x32xf32, #tpu.memory_space<vmem>>, %arg7: memref<1x1x32xf32, #tpu.memory_space<vmem>>, %arg8: memref<1x1x32xf32, #tpu.memory_space<vmem>>, %arg9: memref<1x32x64xbf16, #tpu.memory_space<vmem>>, %arg10: memref<1x1x64xf32, #tpu.memory_space<vmem>>, %arg11: memref<1x64x32xbf16, #tpu.memory_space<vmem>>, %arg12: memref<1x1x32xf32, #tpu.memory_space<vmem>>, %arg13: memref<1x1x32xf32, #tpu.memory_space<vmem>>, %arg14: memref<1x1x32xf32, #tpu.memory_space<vmem>>, %arg15: memref<16x32xf32, #tpu.memory_space<vmem>>) attributes {dimension_semantics = [#tpu.dimension_semantics<arbitrary>], iteration_bounds = array<i64: 2>, scalar_prefetch = 0 : i64, scratch_operands = 0 : i64, tpu.core_type = #tpu.core_type<tc>, window_params = [{pipeline_mode = #tpu.pipeline_mode<synchronous>, transform_indices = @transform_0, window_bounds = array<i64: 16, 32>}, {pipeline_mode = #tpu.pipeline_mode<synchronous>, transform_indices = @transform_1, window_bounds = array<i64: 2, 8>}, {transform_indices = @transform_2, window_bounds = array<i64: 1, 32, 96>}, {transform_indices = @transform_3, window_bounds = array<i64: 1, 1, 96>}, {transform_indices = @transform_4, window_bounds = array<i64: 1, 32, 32>}, {transform_indices = @transform_5, window_bounds = array<i64: 1, 1, 32>}, {transform_indices = @transform_6, window_bounds = array<i64: 1, 1, 32>}, {transform_indices = @transform_7, window_bounds = array<i64: 1, 1, 32>}, {transform_indices = @transform_8, window_bounds = array<i64: 1, 32, 64>}, {transform_indices = @transform_9, window_bounds = array<i64: 1, 1, 64>}, {transform_indices = @transform_10, window_bounds = array<i64: 1, 64, 32>}, {transform_indices = @transform_11, window_bounds = array<i64: 1, 1, 32>}, {transform_indices = @transform_12, window_bounds = array<i64: 1, 1, 32>}, {transform_indices = @transform_13, window_bounds = array<i64: 1, 1, 32>}, {pipeline_mode = #tpu.pipeline_mode<synchronous>, transform_indices = @transform_14, window_bounds = array<i64: 16, 32>}]} {
    %c0_i32 = arith.constant 0 : i32
    %0 = arith.cmpi eq, %arg0, %c0_i32 : i32
    %1 = arith.extui %0 : i1 to i32
    %c0_i32_0 = arith.constant 0 : i32
    %2 = arith.cmpi ne, %1, %c0_i32_0 : i32
    scf.if %2 {
      %c0_79 = arith.constant 0 : index
      %c0_80 = arith.constant 0 : index
      %199 = vector.load %arg1[%c0_79, %c0_80] : memref<16x32xf32, #tpu.memory_space<vmem>>, vector<16x32xf32>
      %c0_81 = arith.constant 0 : index
      %c0_82 = arith.constant 0 : index
      %200 = vector.load %arg15[%c0_81, %c0_82] : memref<16x32xf32, #tpu.memory_space<vmem>>, vector<16x32xf32>
      tpu.vector_store %arg15[%c0_81, %c0_82], %199 {strides = array<i32>} : memref<16x32xf32, #tpu.memory_space<vmem>>, vector<16x32xf32>,
    } else {
    }
    %c0 = arith.constant 0 : index
    %c0_1 = arith.constant 0 : index
    %3 = vector.load %arg15[%c0, %c0_1] : memref<16x32xf32, #tpu.memory_space<vmem>>, vector<16x32xf32>
    %c0_2 = arith.constant 0 : index
    %c0_3 = arith.constant 0 : index
    %4 = vector.load %arg2[%c0_2, %c0_3] : memref<2x8xf32, #tpu.memory_space<vmem>>, vector<2x8xf32>
    %5 = arith.truncf %3 : vector<16x32xf32> to vector<16x32xbf16>
    %c0_4 = arith.constant 0 : index
    %c0_5 = arith.constant 0 : index
    %c0_6 = arith.constant 0 : index
    %6 = vector.load %arg3[%c0_4, %c0_5, %c0_6] : memref<1x32x96xbf16, #tpu.memory_space<vmem>>, vector<1x32x96xbf16>
    %7 = vector.shape_cast %6 : vector<1x32x96xbf16> to vector<32x96xbf16>
    %cst = arith.constant dense<0.000000e+00> : vector<16x96xf32>
    %8 = tpu.matmul %5, %7, %cst {dimension_numbers = #tpu.dot_dimension_numbers<[1], [0], [0], [1], [0, 0, 1, 1], [], []>} : vector<16x32xbf16>, vector<32x96xbf16>, vector<16x96xf32> -> vector<16x96xf32>
    %c0_7 = arith.constant 0 : index
    %c0_8 = arith.constant 0 : index
    %c0_9 = arith.constant 0 : index
    %9 = vector.load %arg4[%c0_7, %c0_8, %c0_9] : memref<1x1x96xf32, #tpu.memory_space<vmem>>, vector<1x1x96xf32>
    %10 = vector.shape_cast %9 : vector<1x1x96xf32> to vector<1x96xf32>
    %11 = vector.broadcast %10 : vector<1x96xf32> to vector<16x96xf32>
    %12 = arith.addf %8, %11 : vector<16x96xf32>
    %13 = vector.extract_strided_slice %12 {offsets = [0, 0], sizes = [16, 32], strides = [1, 1]} : vector<16x96xf32> to vector<16x32xf32>
    %14 = vector.extract_strided_slice %12 {offsets = [0, 32], sizes = [16, 32], strides = [1, 1]} : vector<16x96xf32> to vector<16x32xf32>
    %15 = vector.extract_strided_slice %12 {offsets = [0, 64], sizes = [16, 32], strides = [1, 1]} : vector<16x96xf32> to vector<16x32xf32>
    %16 = vector.extract_strided_slice %13 {offsets = [0, 0], sizes = [8, 32], strides = [1, 1]} : vector<16x32xf32> to vector<8x32xf32>
    %17 = vector.extract_strided_slice %14 {offsets = [0, 0], sizes = [8, 32], strides = [1, 1]} : vector<16x32xf32> to vector<8x32xf32>
    %18 = vector.extract_strided_slice %15 {offsets = [0, 0], sizes = [8, 32], strides = [1, 1]} : vector<16x32xf32> to vector<8x32xf32>
    %19 = vector.extract_strided_slice %4 {offsets = [0, 0], sizes = [1, 8], strides = [1, 1]} : vector<2x8xf32> to vector<1x8xf32>
    %20 = vector.extract_strided_slice %16 {offsets = [0, 0], sizes = [8, 16], strides = [1, 1]} : vector<8x32xf32> to vector<8x16xf32>
    %21 = vector.extract_strided_slice %17 {offsets = [0, 0], sizes = [8, 16], strides = [1, 1]} : vector<8x32xf32> to vector<8x16xf32>
    %22 = vector.extract_strided_slice %18 {offsets = [0, 0], sizes = [8, 16], strides = [1, 1]} : vector<8x32xf32> to vector<8x16xf32>
    %23 = tpu.transpose %21, [1, 0] : vector<8x16xf32> -> vector<16x8xf32>
    %cst_10 = arith.constant dense<0.000000e+00> : vector<8x8xf32>
    %24 = tpu.matmul %20, %23, %cst_10 {dimension_numbers = #tpu.dot_dimension_numbers<[1], [0], [0], [1], [0, 0, 1, 1], [], []>} : vector<8x16xf32>, vector<16x8xf32>, vector<8x8xf32> -> vector<8x8xf32>
    %cst_11 = arith.constant 2.500000e-01 : f32
    %25 = vector.broadcast %cst_11 : f32 to vector<8x8xf32>
    %26 = arith.mulf %24, %25 : vector<8x8xf32>
    %27 = vector.broadcast %19 : vector<1x8xf32> to vector<8x8xf32>
    %28 = arith.addf %26, %27 : vector<8x8xf32>
    %cst_12 = arith.constant dense<0xFF800000> : vector<8xf32>
    %29 = vector.multi_reduction <maximumf>, %28, %cst_12 [1] : vector<8x8xf32> to vector<8xf32>
    %30 = vector.shape_cast %29 : vector<8xf32> to vector<8x1xf32>
    %31 = vector.broadcast %30 : vector<8x1xf32> to vector<8x8xf32>
    %32 = arith.subf %28, %31 : vector<8x8xf32>
    %33 = math.exp %32 : vector<8x8xf32>
    %cst_13 = arith.constant dense<0.000000e+00> : vector<8xf32>
    %34 = vector.multi_reduction <add>, %33, %cst_13 [1] : vector<8x8xf32> to vector<8xf32>
    %35 = vector.shape_cast %34 : vector<8xf32> to vector<8x1xf32>
    %36 = tpu.reciprocal %35 {approx = true} : vector<8x1xf32> -> vector<8x1xf32>
    %37 = vector.broadcast %36 : vector<8x1xf32> to vector<8x8xf32>
    %38 = arith.mulf %33, %37 : vector<8x8xf32>
    %cst_14 = arith.constant dense<0.000000e+00> : vector<8x16xf32>
    %39 = tpu.matmul %38, %22, %cst_14 {dimension_numbers = #tpu.dot_dimension_numbers<[1], [0], [0], [1], [0, 0, 1, 1], [], []>} : vector<8x8xf32>, vector<8x16xf32>, vector<8x16xf32> -> vector<8x16xf32>
    %40 = vector.extract_strided_slice %16 {offsets = [0, 16], sizes = [8, 16], strides = [1, 1]} : vector<8x32xf32> to vector<8x16xf32>
    %41 = vector.extract_strided_slice %17 {offsets = [0, 16], sizes = [8, 16], strides = [1, 1]} : vector<8x32xf32> to vector<8x16xf32>
    %42 = vector.extract_strided_slice %18 {offsets = [0, 16], sizes = [8, 16], strides = [1, 1]} : vector<8x32xf32> to vector<8x16xf32>
    %43 = tpu.transpose %41, [1, 0] : vector<8x16xf32> -> vector<16x8xf32>
    %cst_15 = arith.constant dense<0.000000e+00> : vector<8x8xf32>
    %44 = tpu.matmul %40, %43, %cst_15 {dimension_numbers = #tpu.dot_dimension_numbers<[1], [0], [0], [1], [0, 0, 1, 1], [], []>} : vector<8x16xf32>, vector<16x8xf32>, vector<8x8xf32> -> vector<8x8xf32>
    %cst_16 = arith.constant 2.500000e-01 : f32
    %45 = vector.broadcast %cst_16 : f32 to vector<8x8xf32>
    %46 = arith.mulf %44, %45 : vector<8x8xf32>
    %47 = vector.broadcast %19 : vector<1x8xf32> to vector<8x8xf32>
    %48 = arith.addf %46, %47 : vector<8x8xf32>
    %cst_17 = arith.constant dense<0xFF800000> : vector<8xf32>
    %49 = vector.multi_reduction <maximumf>, %48, %cst_17 [1] : vector<8x8xf32> to vector<8xf32>
    %50 = vector.shape_cast %49 : vector<8xf32> to vector<8x1xf32>
    %51 = vector.broadcast %50 : vector<8x1xf32> to vector<8x8xf32>
    %52 = arith.subf %48, %51 : vector<8x8xf32>
    %53 = math.exp %52 : vector<8x8xf32>
    %cst_18 = arith.constant dense<0.000000e+00> : vector<8xf32>
    %54 = vector.multi_reduction <add>, %53, %cst_18 [1] : vector<8x8xf32> to vector<8xf32>
    %55 = vector.shape_cast %54 : vector<8xf32> to vector<8x1xf32>
    %56 = tpu.reciprocal %55 {approx = true} : vector<8x1xf32> -> vector<8x1xf32>
    %57 = vector.broadcast %56 : vector<8x1xf32> to vector<8x8xf32>
    %58 = arith.mulf %53, %57 : vector<8x8xf32>
    %cst_19 = arith.constant dense<0.000000e+00> : vector<8x16xf32>
    %59 = tpu.matmul %58, %42, %cst_19 {dimension_numbers = #tpu.dot_dimension_numbers<[1], [0], [0], [1], [0, 0, 1, 1], [], []>} : vector<8x8xf32>, vector<8x16xf32>, vector<8x16xf32> -> vector<8x16xf32>
    %60 = tpu.concatenate %39, %59 in 1 : vector<8x16xf32>, vector<8x16xf32> -> vector<8x32xf32>
    %61 = vector.extract_strided_slice %13 {offsets = [8, 0], sizes = [8, 32], strides = [1, 1]} : vector<16x32xf32> to vector<8x32xf32>
    %62 = vector.extract_strided_slice %14 {offsets = [8, 0], sizes = [8, 32], strides = [1, 1]} : vector<16x32xf32> to vector<8x32xf32>
    %63 = vector.extract_strided_slice %15 {offsets = [8, 0], sizes = [8, 32], strides = [1, 1]} : vector<16x32xf32> to vector<8x32xf32>
    %64 = vector.extract_strided_slice %4 {offsets = [1, 0], sizes = [1, 8], strides = [1, 1]} : vector<2x8xf32> to vector<1x8xf32>
    %65 = vector.extract_strided_slice %61 {offsets = [0, 0], sizes = [8, 16], strides = [1, 1]} : vector<8x32xf32> to vector<8x16xf32>
    %66 = vector.extract_strided_slice %62 {offsets = [0, 0], sizes = [8, 16], strides = [1, 1]} : vector<8x32xf32> to vector<8x16xf32>
    %67 = vector.extract_strided_slice %63 {offsets = [0, 0], sizes = [8, 16], strides = [1, 1]} : vector<8x32xf32> to vector<8x16xf32>
    %68 = tpu.transpose %66, [1, 0] : vector<8x16xf32> -> vector<16x8xf32>
    %cst_20 = arith.constant dense<0.000000e+00> : vector<8x8xf32>
    %69 = tpu.matmul %65, %68, %cst_20 {dimension_numbers = #tpu.dot_dimension_numbers<[1], [0], [0], [1], [0, 0, 1, 1], [], []>} : vector<8x16xf32>, vector<16x8xf32>, vector<8x8xf32> -> vector<8x8xf32>
    %cst_21 = arith.constant 2.500000e-01 : f32
    %70 = vector.broadcast %cst_21 : f32 to vector<8x8xf32>
    %71 = arith.mulf %69, %70 : vector<8x8xf32>
    %72 = vector.broadcast %64 : vector<1x8xf32> to vector<8x8xf32>
    %73 = arith.addf %71, %72 : vector<8x8xf32>
    %cst_22 = arith.constant dense<0xFF800000> : vector<8xf32>
    %74 = vector.multi_reduction <maximumf>, %73, %cst_22 [1] : vector<8x8xf32> to vector<8xf32>
    %75 = vector.shape_cast %74 : vector<8xf32> to vector<8x1xf32>
    %76 = vector.broadcast %75 : vector<8x1xf32> to vector<8x8xf32>
    %77 = arith.subf %73, %76 : vector<8x8xf32>
    %78 = math.exp %77 : vector<8x8xf32>
    %cst_23 = arith.constant dense<0.000000e+00> : vector<8xf32>
    %79 = vector.multi_reduction <add>, %78, %cst_23 [1] : vector<8x8xf32> to vector<8xf32>
    %80 = vector.shape_cast %79 : vector<8xf32> to vector<8x1xf32>
    %81 = tpu.reciprocal %80 {approx = true} : vector<8x1xf32> -> vector<8x1xf32>
    %82 = vector.broadcast %81 : vector<8x1xf32> to vector<8x8xf32>
    %83 = arith.mulf %78, %82 : vector<8x8xf32>
    %cst_24 = arith.constant dense<0.000000e+00> : vector<8x16xf32>
    %84 = tpu.matmul %83, %67, %cst_24 {dimension_numbers = #tpu.dot_dimension_numbers<[1], [0], [0], [1], [0, 0, 1, 1], [], []>} : vector<8x8xf32>, vector<8x16xf32>, vector<8x16xf32> -> vector<8x16xf32>
    %85 = vector.extract_strided_slice %61 {offsets = [0, 16], sizes = [8, 16], strides = [1, 1]} : vector<8x32xf32> to vector<8x16xf32>
    %86 = vector.extract_strided_slice %62 {offsets = [0, 16], sizes = [8, 16], strides = [1, 1]} : vector<8x32xf32> to vector<8x16xf32>
    %87 = vector.extract_strided_slice %63 {offsets = [0, 16], sizes = [8, 16], strides = [1, 1]} : vector<8x32xf32> to vector<8x16xf32>
    %88 = tpu.transpose %86, [1, 0] : vector<8x16xf32> -> vector<16x8xf32>
    %cst_25 = arith.constant dense<0.000000e+00> : vector<8x8xf32>
    %89 = tpu.matmul %85, %88, %cst_25 {dimension_numbers = #tpu.dot_dimension_numbers<[1], [0], [0], [1], [0, 0, 1, 1], [], []>} : vector<8x16xf32>, vector<16x8xf32>, vector<8x8xf32> -> vector<8x8xf32>
    %cst_26 = arith.constant 2.500000e-01 : f32
    %90 = vector.broadcast %cst_26 : f32 to vector<8x8xf32>
    %91 = arith.mulf %89, %90 : vector<8x8xf32>
    %92 = vector.broadcast %64 : vector<1x8xf32> to vector<8x8xf32>
    %93 = arith.addf %91, %92 : vector<8x8xf32>
    %cst_27 = arith.constant dense<0xFF800000> : vector<8xf32>
    %94 = vector.multi_reduction <maximumf>, %93, %cst_27 [1] : vector<8x8xf32> to vector<8xf32>
    %95 = vector.shape_cast %94 : vector<8xf32> to vector<8x1xf32>
    %96 = vector.broadcast %95 : vector<8x1xf32> to vector<8x8xf32>
    %97 = arith.subf %93, %96 : vector<8x8xf32>
    %98 = math.exp %97 : vector<8x8xf32>
    %cst_28 = arith.constant dense<0.000000e+00> : vector<8xf32>
    %99 = vector.multi_reduction <add>, %98, %cst_28 [1] : vector<8x8xf32> to vector<8xf32>
    %100 = vector.shape_cast %99 : vector<8xf32> to vector<8x1xf32>
    %101 = tpu.reciprocal %100 {approx = true} : vector<8x1xf32> -> vector<8x1xf32>
    %102 = vector.broadcast %101 : vector<8x1xf32> to vector<8x8xf32>
    %103 = arith.mulf %98, %102 : vector<8x8xf32>
    %cst_29 = arith.constant dense<0.000000e+00> : vector<8x16xf32>
    %104 = tpu.matmul %103, %87, %cst_29 {dimension_numbers = #tpu.dot_dimension_numbers<[1], [0], [0], [1], [0, 0, 1, 1], [], []>} : vector<8x8xf32>, vector<8x16xf32>, vector<8x16xf32> -> vector<8x16xf32>
    %105 = tpu.concatenate %84, %104 in 1 : vector<8x16xf32>, vector<8x16xf32> -> vector<8x32xf32>
    %106 = tpu.concatenate %60, %105 in 0 : vector<8x32xf32>, vector<8x32xf32> -> vector<16x32xf32>
    %107 = arith.truncf %106 : vector<16x32xf32> to vector<16x32xbf16>
    %c0_30 = arith.constant 0 : index
    %c0_31 = arith.constant 0 : index
    %c0_32 = arith.constant 0 : index
    %108 = vector.load %arg5[%c0_30, %c0_31, %c0_32] : memref<1x32x32xbf16, #tpu.memory_space<vmem>>, vector<1x32x32xbf16>
    %109 = vector.shape_cast %108 : vector<1x32x32xbf16> to vector<32x32xbf16>
    %cst_33 = arith.constant dense<0.000000e+00> : vector<16x32xf32>
    %110 = tpu.matmul %107, %109, %cst_33 {dimension_numbers = #tpu.dot_dimension_numbers<[1], [0], [0], [1], [0, 0, 1, 1], [], []>} : vector<16x32xbf16>, vector<32x32xbf16>, vector<16x32xf32> -> vector<16x32xf32>
    %c0_34 = arith.constant 0 : index
    %c0_35 = arith.constant 0 : index
    %c0_36 = arith.constant 0 : index
    %111 = vector.load %arg6[%c0_34, %c0_35, %c0_36] : memref<1x1x32xf32, #tpu.memory_space<vmem>>, vector<1x1x32xf32>
    %112 = vector.shape_cast %111 : vector<1x1x32xf32> to vector<1x32xf32>
    %113 = vector.broadcast %112 : vector<1x32xf32> to vector<16x32xf32>
    %114 = arith.addf %110, %113 : vector<16x32xf32>
    %115 = arith.addf %114, %3 : vector<16x32xf32>
    %c0_37 = arith.constant 0 : index
    %c0_38 = arith.constant 0 : index
    %c0_39 = arith.constant 0 : index
    %116 = vector.load %arg7[%c0_37, %c0_38, %c0_39] : memref<1x1x32xf32, #tpu.memory_space<vmem>>, vector<1x1x32xf32>
    %117 = vector.shape_cast %116 : vector<1x1x32xf32> to vector<1x32xf32>
    %c0_40 = arith.constant 0 : index
    %c0_41 = arith.constant 0 : index
    %c0_42 = arith.constant 0 : index
    %118 = vector.load %arg8[%c0_40, %c0_41, %c0_42] : memref<1x1x32xf32, #tpu.memory_space<vmem>>, vector<1x1x32xf32>
    %119 = vector.shape_cast %118 : vector<1x1x32xf32> to vector<1x32xf32>
    %cst_43 = arith.constant dense<0.000000e+00> : vector<16xf32>
    %120 = vector.multi_reduction <add>, %115, %cst_43 [1] : vector<16x32xf32> to vector<16xf32>
    %121 = vector.shape_cast %120 : vector<16xf32> to vector<16x1xf32>
    %cst_44 = arith.constant 3.200000e+01 : f32
    %122 = vector.broadcast %cst_44 : f32 to vector<16x1xf32>
    %123 = arith.divf %121, %122 : vector<16x1xf32>
    %124 = vector.broadcast %123 : vector<16x1xf32> to vector<16x32xf32>
    %125 = arith.subf %115, %124 : vector<16x32xf32>
    %126 = arith.mulf %125, %125 : vector<16x32xf32>
    %cst_45 = arith.constant dense<0.000000e+00> : vector<16xf32>
    %127 = vector.multi_reduction <add>, %126, %cst_45 [1] : vector<16x32xf32> to vector<16xf32>
    %128 = vector.shape_cast %127 : vector<16xf32> to vector<16x1xf32>
    %cst_46 = arith.constant 3.200000e+01 : f32
    %129 = vector.broadcast %cst_46 : f32 to vector<16x1xf32>
    %130 = arith.divf %128, %129 : vector<16x1xf32>
    %131 = vector.broadcast %123 : vector<16x1xf32> to vector<16x32xf32>
    %132 = arith.subf %115, %131 : vector<16x32xf32>
    %cst_47 = arith.constant 9.99999996E-13 : f32
    %133 = vector.broadcast %cst_47 : f32 to vector<16x1xf32>
    %134 = arith.addf %130, %133 : vector<16x1xf32>
    %135 = math.rsqrt %134 : vector<16x1xf32>
    %136 = vector.broadcast %135 : vector<16x1xf32> to vector<16x32xf32>
    %137 = arith.mulf %132, %136 : vector<16x32xf32>
    %138 = vector.broadcast %117 : vector<1x32xf32> to vector<16x32xf32>
    %139 = arith.mulf %137, %138 : vector<16x32xf32>
    %140 = vector.broadcast %119 : vector<1x32xf32> to vector<16x32xf32>
    %141 = arith.addf %139, %140 : vector<16x32xf32>
    %142 = arith.truncf %141 : vector<16x32xf32> to vector<16x32xbf16>
    %c0_48 = arith.constant 0 : index
    %c0_49 = arith.constant 0 : index
    %c0_50 = arith.constant 0 : index
    %143 = vector.load %arg9[%c0_48, %c0_49, %c0_50] : memref<1x32x64xbf16, #tpu.memory_space<vmem>>, vector<1x32x64xbf16>
    %144 = vector.shape_cast %143 : vector<1x32x64xbf16> to vector<32x64xbf16>
    %cst_51 = arith.constant dense<0.000000e+00> : vector<16x64xf32>
    %145 = tpu.matmul %142, %144, %cst_51 {dimension_numbers = #tpu.dot_dimension_numbers<[1], [0], [0], [1], [0, 0, 1, 1], [], []>} : vector<16x32xbf16>, vector<32x64xbf16>, vector<16x64xf32> -> vector<16x64xf32>
    %c0_52 = arith.constant 0 : index
    %c0_53 = arith.constant 0 : index
    %c0_54 = arith.constant 0 : index
    %146 = vector.load %arg10[%c0_52, %c0_53, %c0_54] : memref<1x1x64xf32, #tpu.memory_space<vmem>>, vector<1x1x64xf32>
    %147 = vector.shape_cast %146 : vector<1x1x64xf32> to vector<1x64xf32>
    %148 = vector.broadcast %147 : vector<1x64xf32> to vector<16x64xf32>
    %149 = arith.addf %145, %148 : vector<16x64xf32>
    %cst_55 = arith.constant 5.000000e-01 : f32
    %150 = vector.broadcast %cst_55 : f32 to vector<16x64xf32>
    %151 = arith.mulf %150, %149 : vector<16x64xf32>
    %cst_56 = arith.constant 4.471500e-02 : f32
    %152 = vector.broadcast %cst_56 : f32 to vector<16x64xf32>
    %153 = arith.mulf %152, %149 : vector<16x64xf32>
    %154 = arith.mulf %153, %149 : vector<16x64xf32>
    %155 = arith.mulf %154, %149 : vector<16x64xf32>
    %156 = arith.addf %149, %155 : vector<16x64xf32>
    %cst_57 = arith.constant 0.797884583 : f32
    %157 = vector.broadcast %cst_57 : f32 to vector<16x64xf32>
    %158 = arith.mulf %157, %156 : vector<16x64xf32>
    %159 = math.tanh %158 : vector<16x64xf32>
    %cst_58 = arith.constant 1.000000e+00 : f32
    %160 = vector.broadcast %cst_58 : f32 to vector<16x64xf32>
    %161 = arith.addf %160, %159 : vector<16x64xf32>
    %162 = arith.mulf %151, %161 : vector<16x64xf32>
    %163 = arith.truncf %162 : vector<16x64xf32> to vector<16x64xbf16>
    %c0_59 = arith.constant 0 : index
    %c0_60 = arith.constant 0 : index
    %c0_61 = arith.constant 0 : index
    %164 = vector.load %arg11[%c0_59, %c0_60, %c0_61] : memref<1x64x32xbf16, #tpu.memory_space<vmem>>, vector<1x64x32xbf16>
    %165 = vector.shape_cast %164 : vector<1x64x32xbf16> to vector<64x32xbf16>
    %cst_62 = arith.constant dense<0.000000e+00> : vector<16x32xf32>
    %166 = tpu.matmul %163, %165, %cst_62 {dimension_numbers = #tpu.dot_dimension_numbers<[1], [0], [0], [1], [0, 0, 1, 1], [], []>} : vector<16x64xbf16>, vector<64x32xbf16>, vector<16x32xf32> -> vector<16x32xf32>
    %c0_63 = arith.constant 0 : index
    %c0_64 = arith.constant 0 : index
    %c0_65 = arith.constant 0 : index
    %167 = vector.load %arg12[%c0_63, %c0_64, %c0_65] : memref<1x1x32xf32, #tpu.memory_space<vmem>>, vector<1x1x32xf32>
    %168 = vector.shape_cast %167 : vector<1x1x32xf32> to vector<1x32xf32>
    %169 = vector.broadcast %168 : vector<1x32xf32> to vector<16x32xf32>
    %170 = arith.addf %166, %169 : vector<16x32xf32>
    %171 = arith.addf %170, %141 : vector<16x32xf32>
    %c0_66 = arith.constant 0 : index
    %c0_67 = arith.constant 0 : index
    %c0_68 = arith.constant 0 : index
    %172 = vector.load %arg13[%c0_66, %c0_67, %c0_68] : memref<1x1x32xf32, #tpu.memory_space<vmem>>, vector<1x1x32xf32>
    %173 = vector.shape_cast %172 : vector<1x1x32xf32> to vector<1x32xf32>
    %c0_69 = arith.constant 0 : index
    %c0_70 = arith.constant 0 : index
    %c0_71 = arith.constant 0 : index
    %174 = vector.load %arg14[%c0_69, %c0_70, %c0_71] : memref<1x1x32xf32, #tpu.memory_space<vmem>>, vector<1x1x32xf32>
    %175 = vector.shape_cast %174 : vector<1x1x32xf32> to vector<1x32xf32>
    %cst_72 = arith.constant dense<0.000000e+00> : vector<16xf32>
    %176 = vector.multi_reduction <add>, %171, %cst_72 [1] : vector<16x32xf32> to vector<16xf32>
    %177 = vector.shape_cast %176 : vector<16xf32> to vector<16x1xf32>
    %cst_73 = arith.constant 3.200000e+01 : f32
    %178 = vector.broadcast %cst_73 : f32 to vector<16x1xf32>
    %179 = arith.divf %177, %178 : vector<16x1xf32>
    %180 = vector.broadcast %179 : vector<16x1xf32> to vector<16x32xf32>
    %181 = arith.subf %171, %180 : vector<16x32xf32>
    %182 = arith.mulf %181, %181 : vector<16x32xf32>
    %cst_74 = arith.constant dense<0.000000e+00> : vector<16xf32>
    %183 = vector.multi_reduction <add>, %182, %cst_74 [1] : vector<16x32xf32> to vector<16xf32>
    %184 = vector.shape_cast %183 : vector<16xf32> to vector<16x1xf32>
    %cst_75 = arith.constant 3.200000e+01 : f32
    %185 = vector.broadcast %cst_75 : f32 to vector<16x1xf32>
    %186 = arith.divf %184, %185 : vector<16x1xf32>
    %187 = vector.broadcast %179 : vector<16x1xf32> to vector<16x32xf32>
    %188 = arith.subf %171, %187 : vector<16x32xf32>
    %cst_76 = arith.constant 9.99999996E-13 : f32
    %189 = vector.broadcast %cst_76 : f32 to vector<16x1xf32>
    %190 = arith.addf %186, %189 : vector<16x1xf32>
    %191 = math.rsqrt %190 : vector<16x1xf32>
    %192 = vector.broadcast %191 : vector<16x1xf32> to vector<16x32xf32>
    %193 = arith.mulf %188, %192 : vector<16x32xf32>
    %194 = vector.broadcast %173 : vector<1x32xf32> to vector<16x32xf32>
    %195 = arith.mulf %193, %194 : vector<16x32xf32>
    %196 = vector.broadcast %175 : vector<1x32xf32> to vector<16x32xf32>
    %197 = arith.addf %195, %196 : vector<16x32xf32>
    %c0_77 = arith.constant 0 : index
    %c0_78 = arith.constant 0 : index
    %198 = vector.load %arg15[%c0_77, %c0_78] : memref<16x32xf32, #tpu.memory_space<vmem>>, vector<16x32xf32>
    tpu.vector_store %arg15[%c0_77, %c0_78], %197 {strides = array<i32>} : memref<16x32xf32, #tpu.memory_space<vmem>>, vector<16x32xf32>,
    return
  }
  func.func @transform_0(%arg0: i32) -> (i32, i32) {
    %c0_i32 = arith.constant 0 : i32
    %c0_i32_0 = arith.constant 0 : i32
    %c0_i32_1 = arith.constant 0 : i32
    return %c0_i32, %c0_i32_0 : i32, i32
  }
  func.func @transform_1(%arg0: i32) -> (i32, i32) {
    %c0_i32 = arith.constant 0 : i32
    %c0_i32_0 = arith.constant 0 : i32
    %c0_i32_1 = arith.constant 0 : i32
    return %c0_i32, %c0_i32_0 : i32, i32
  }
  func.func @transform_2(%arg0: i32) -> (i32, i32, i32) {
    %c0_i32 = arith.constant 0 : i32
    %c0_i32_0 = arith.constant 0 : i32
    %c0_i32_1 = arith.constant 0 : i32
    return %arg0, %c0_i32, %c0_i32_0 : i32, i32, i32
  }
  func.func @transform_3(%arg0: i32) -> (i32, i32, i32) {
    %c0_i32 = arith.constant 0 : i32
    %c0_i32_0 = arith.constant 0 : i32
    %c0_i32_1 = arith.constant 0 : i32
    return %arg0, %c0_i32, %c0_i32_0 : i32, i32, i32
  }
  func.func @transform_4(%arg0: i32) -> (i32, i32, i32) {
    %c0_i32 = arith.constant 0 : i32
    %c0_i32_0 = arith.constant 0 : i32
    %c0_i32_1 = arith.constant 0 : i32
    return %arg0, %c0_i32, %c0_i32_0 : i32, i32, i32
  }
  func.func @transform_5(%arg0: i32) -> (i32, i32, i32) {
    %c0_i32 = arith.constant 0 : i32
    %c0_i32_0 = arith.constant 0 : i32
    %c0_i32_1 = arith.constant 0 : i32
    return %arg0, %c0_i32, %c0_i32_0 : i32, i32, i32
  }
  func.func @transform_6(%arg0: i32) -> (i32, i32, i32) {
    %c0_i32 = arith.constant 0 : i32
    %c0_i32_0 = arith.constant 0 : i32
    %c0_i32_1 = arith.constant 0 : i32
    return %arg0, %c0_i32, %c0_i32_0 : i32, i32, i32
  }
  func.func @transform_7(%arg0: i32) -> (i32, i32, i32) {
    %c0_i32 = arith.constant 0 : i32
    %c0_i32_0 = arith.constant 0 : i32
    %c0_i32_1 = arith.constant 0 : i32
    return %arg0, %c0_i32, %c0_i32_0 : i32, i32, i32
  }
  func.func @transform_8(%arg0: i32) -> (i32, i32, i32) {
    %c0_i32 = arith.constant 0 : i32
    %c0_i32_0 = arith.constant 0 : i32
    %c0_i32_1 = arith.constant 0 : i32
    return %arg0, %c0_i32, %c0_i32_0 : i32, i32, i32
  }
  func.func @transform_9(%arg0: i32) -> (i32, i32, i32) {
    %c0_i32 = arith.constant 0 : i32
    %c0_i32_0 = arith.constant 0 : i32
    %c0_i32_1 = arith.constant 0 : i32
    return %arg0, %c0_i32, %c0_i32_0 : i32, i32, i32
  }
  func.func @transform_10(%arg0: i32) -> (i32, i32, i32) {
    %c0_i32 = arith.constant 0 : i32
    %c0_i32_0 = arith.constant 0 : i32
    %c0_i32_1 = arith.constant 0 : i32
    return %arg0, %c0_i32, %c0_i32_0 : i32, i32, i32
  }
  func.func @transform_11(%arg0: i32) -> (i32, i32, i32) {
    %c0_i32 = arith.constant 0 : i32
    %c0_i32_0 = arith.constant 0 : i32
    %c0_i32_1 = arith.constant 0 : i32
    return %arg0, %c0_i32, %c0_i32_0 : i32, i32, i32
  }
  func.func @transform_12(%arg0: i32) -> (i32, i32, i32) {
    %c0_i32 = arith.constant 0 : i32
    %c0_i32_0 = arith.constant 0 : i32
    %c0_i32_1 = arith.constant 0 : i32
    return %arg0, %c0_i32, %c0_i32_0 : i32, i32, i32
  }
  func.func @transform_13(%arg0: i32) -> (i32, i32, i32) {
    %c0_i32 = arith.constant 0 : i32
    %c0_i32_0 = arith.constant 0 : i32
    %c0_i32_1 = arith.constant 0 : i32
    return %arg0, %c0_i32, %c0_i32_0 : i32, i32, i32
  }
  func.func @transform_14(%arg0: i32) -> (i32, i32) {
    %c0_i32 = arith.constant 0 : i32
    %c0_i32_0 = arith.constant 0 : i32
    %c0_i32_1 = arith.constant 0 : i32
    return %c0_i32, %c0_i32_0 : i32, i32
  }
}

module attributes {stable_mosaic.version = 11 : i64} {
  func.func @_head_kernel(%arg0: i32, %arg1: memref<2x32xf32, #tpu.memory_space<vmem>>, %arg2: memref<32x32xbf16, #tpu.memory_space<vmem>>, %arg3: memref<1x32xf32, #tpu.memory_space<vmem>>, %arg4: memref<32x128xbf16, #tpu.memory_space<vmem>>, %arg5: memref<1x128xf32, #tpu.memory_space<vmem>>, %arg6: memref<2x128xf32, #tpu.memory_space<vmem>>) attributes {dimension_semantics = [#tpu.dimension_semantics<arbitrary>], iteration_bounds = array<i64: 1>, scalar_prefetch = 0 : i64, scratch_operands = 0 : i64, tpu.core_type = #tpu.core_type<tc>, window_params = [{pipeline_mode = #tpu.pipeline_mode<synchronous>, transform_indices = @transform_0, window_bounds = array<i64: 2, 32>}, {pipeline_mode = #tpu.pipeline_mode<synchronous>, transform_indices = @transform_1, window_bounds = array<i64: 32, 32>}, {pipeline_mode = #tpu.pipeline_mode<synchronous>, transform_indices = @transform_2, window_bounds = array<i64: 1, 32>}, {pipeline_mode = #tpu.pipeline_mode<synchronous>, transform_indices = @transform_3, window_bounds = array<i64: 32, 128>}, {pipeline_mode = #tpu.pipeline_mode<synchronous>, transform_indices = @transform_4, window_bounds = array<i64: 1, 128>}, {pipeline_mode = #tpu.pipeline_mode<synchronous>, transform_indices = @transform_5, window_bounds = array<i64: 2, 128>}]} {
    %c0 = arith.constant 0 : index
    %c0_0 = arith.constant 0 : index
    %0 = vector.load %arg1[%c0, %c0_0] : memref<2x32xf32, #tpu.memory_space<vmem>>, vector<2x32xf32>
    %1 = arith.truncf %0 : vector<2x32xf32> to vector<2x32xbf16>
    %c0_1 = arith.constant 0 : index
    %c0_2 = arith.constant 0 : index
    %2 = vector.load %arg2[%c0_1, %c0_2] : memref<32x32xbf16, #tpu.memory_space<vmem>>, vector<32x32xbf16>
    %cst = arith.constant dense<0.000000e+00> : vector<2x32xf32>
    %3 = tpu.matmul %1, %2, %cst {dimension_numbers = #tpu.dot_dimension_numbers<[1], [0], [0], [1], [0, 0, 1, 1], [], []>} : vector<2x32xbf16>, vector<32x32xbf16>, vector<2x32xf32> -> vector<2x32xf32>
    %c0_3 = arith.constant 0 : index
    %c0_4 = arith.constant 0 : index
    %4 = vector.load %arg3[%c0_3, %c0_4] : memref<1x32xf32, #tpu.memory_space<vmem>>, vector<1x32xf32>
    %5 = vector.broadcast %4 : vector<1x32xf32> to vector<2x32xf32>
    %6 = arith.addf %3, %5 : vector<2x32xf32>
    %7 = math.tanh %6 : vector<2x32xf32>
    %8 = arith.truncf %7 : vector<2x32xf32> to vector<2x32xbf16>
    %c0_5 = arith.constant 0 : index
    %c0_6 = arith.constant 0 : index
    %9 = vector.load %arg4[%c0_5, %c0_6] : memref<32x128xbf16, #tpu.memory_space<vmem>>, vector<32x128xbf16>
    %cst_7 = arith.constant dense<0.000000e+00> : vector<2x128xf32>
    %10 = tpu.matmul %8, %9, %cst_7 {dimension_numbers = #tpu.dot_dimension_numbers<[1], [0], [0], [1], [0, 0, 1, 1], [], []>} : vector<2x32xbf16>, vector<32x128xbf16>, vector<2x128xf32> -> vector<2x128xf32>
    %c0_8 = arith.constant 0 : index
    %c0_9 = arith.constant 0 : index
    %11 = vector.load %arg5[%c0_8, %c0_9] : memref<1x128xf32, #tpu.memory_space<vmem>>, vector<1x128xf32>
    %12 = vector.broadcast %11 : vector<1x128xf32> to vector<2x128xf32>
    %13 = arith.addf %10, %12 : vector<2x128xf32>
    %cst_10 = arith.constant 0.000000e+00 : f32
    %14 = vector.broadcast %cst_10 : f32 to vector<2x128xf32>
    %15 = arith.maximumf %13, %14 : vector<2x128xf32>
    %c0_11 = arith.constant 0 : index
    %c0_12 = arith.constant 0 : index
    %16 = vector.load %arg6[%c0_11, %c0_12] : memref<2x128xf32, #tpu.memory_space<vmem>>, vector<2x128xf32>
    tpu.vector_store %arg6[%c0_11, %c0_12], %15 {strides = array<i32>} : memref<2x128xf32, #tpu.memory_space<vmem>>, vector<2x128xf32>,
    return
  }
  func.func @transform_0(%arg0: i32) -> (i32, i32) {
    %c0_i32 = arith.constant 0 : i32
    %c0_i32_0 = arith.constant 0 : i32
    %c0_i32_1 = arith.constant 0 : i32
    return %c0_i32, %c0_i32_0 : i32, i32
  }
  func.func @transform_1(%arg0: i32) -> (i32, i32) {
    %c0_i32 = arith.constant 0 : i32
    %c0_i32_0 = arith.constant 0 : i32
    %c0_i32_1 = arith.constant 0 : i32
    return %c0_i32, %c0_i32_0 : i32, i32
  }
  func.func @transform_2(%arg0: i32) -> (i32, i32) {
    %c0_i32 = arith.constant 0 : i32
    %c0_i32_0 = arith.constant 0 : i32
    %c0_i32_1 = arith.constant 0 : i32
    return %c0_i32, %c0_i32_0 : i32, i32
  }
  func.func @transform_3(%arg0: i32) -> (i32, i32) {
    %c0_i32 = arith.constant 0 : i32
    %c0_i32_0 = arith.constant 0 : i32
    %c0_i32_1 = arith.constant 0 : i32
    return %c0_i32, %c0_i32_0 : i32, i32
  }
  func.func @transform_4(%arg0: i32) -> (i32, i32) {
    %c0_i32 = arith.constant 0 : i32
    %c0_i32_0 = arith.constant 0 : i32
    %c0_i32_1 = arith.constant 0 : i32
    return %c0_i32, %c0_i32_0 : i32, i32
  }
  func.func @transform_5(%arg0: i32) -> (i32, i32) {
    %c0_i32 = arith.constant 0 : i32
    %c0_i32_0 = arith.constant 0 : i32
    %c0_i32_1 = arith.constant 0 : i32
    return %c0_i32, %c0_i32_0 : i32, i32
  }
}

</mosaic_0001>

<llo_original>
// kernel: bert_classifier_forward.3
$region0: #{bert_classifier_forward.3}
  #allocation0 [shape = 'u32[]', space=smem, size = 0x4, offset = 0x4, fixed_abs, tag = 'smem constant byte address 0x4 - core index']
  #allocation1 [shape = 'u32[144,128]{1,0:T(1,128)}', space=vmem, size = 0x12000, scoped, tag = 'internal scratch']
  %s0 = inlined_call_operand.vmem [shape: f32[16,32], index: 0, kind: input, shape index: {}]
  %s1 = inlined_call_operand.vmem [shape: f32[1,32], index: 1, kind: input, shape index: {}]
  %s2 = inlined_call_operand.vmem [shape: f32[1,32], index: 2, kind: input, shape index: {}]
  %s3 = inlined_call_operand.vmem [shape: f32[16,32], index: 3, kind: output, shape index: {}]
  %s4 = sld [smem:[#allocation0]]
  $region22: #{bert_classifier_forward.3} parent=0
    _
  %s6 = ssub.s32 1, %s4
  %s7 = scalar_select 0, %s6, %s4
  // Predicated region
  $region2: #{bert_classifier_forward.3} parent=0 // pred_check
    _
  $region3: #{bert_classifier_forward.3} parent=0 // pred_check_branch
    %9 = sbr.rel (0) target = $region5
  $region4: #{bert_classifier_forward.3} parent=0 // pred_region
    _
  $region5: #{bert_classifier_forward.3} parent=0 // pred_fallthru
    _
  // Predicated region
  $region6: #{bert_classifier_forward.3} parent=0 // pred_check
    _
  $region7: #{bert_classifier_forward.3} parent=0 // pred_check_branch
    %11 = sbr.rel (0) target = $region9
  $region8: #{bert_classifier_forward.3} parent=0 // pred_region
    _
  $region9: #{bert_classifier_forward.3} parent=0 // pred_fallthru
    _
  // Predicated region
  $region10: #{bert_classifier_forward.3} parent=0 // pred_check
    _
  $region11: #{bert_classifier_forward.3} parent=0 // pred_check_branch
    %13 = sbr.rel (0) target = $region13
  $region12: #{bert_classifier_forward.3} parent=0 // pred_region
    _
  $region13: #{bert_classifier_forward.3} parent=0 // pred_fallthru
    _
  %v14 = vld [vmem:[%s0] sm:$0xff]
  %v15 = vld [vmem:[%s0 + $0x8] sm:$0xff]
  %v16 = vld [vmem:[%s1] sm:$0x1]
  %v17 = vld [vmem:[%s2] sm:$0x1]
  %vm18 = vcmask 261120
  %v19 = vsel %vm18, %v14, 0.0
  %20 = vadd.xlane.f32.xlu0 %v19
  %v21 = vpop.xlane.xlu0 %20
  %v22 = vsel %vm18, %v15, 0.0
  %23 = vadd.xlane.f32.xlu0 %v22
  %v24 = vpop.xlane.xlu0 %23
  %v25 = vrcp.pop 32.0
  %v26 = vmul.f32 %v21, %v25
  %v27 = vmul.f32 %v24, %v25
  %v28 = vsub.f32 %v14, %v26
  %v29 = vsub.f32 %v15, %v27
  %v30 = vmul.f32 %v28, %v28
  %v31 = vmul.f32 %v29, %v29
  %v32 = vsel %vm18, %v30, 0.0
  %33 = vadd.xlane.f32.xlu0 %v32
  %v34 = vpop.xlane.xlu0 %33
  %v35 = vsel %vm18, %v31, 0.0
  %36 = vadd.xlane.f32.xlu0 %v35
  %v37 = vpop.xlane.xlu0 %36
  %v38 = vmul.f32 %v34, %v25
  %v39 = vmul.f32 %v37, %v25
  %v40 = vadd.f32 %v38, 1e-12
  %v41 = vadd.f32 %v39, 1e-12
  %v42 = vrsqrt.pop %v40
  %v43 = vrsqrt.pop %v41
  %v44 = vmul.f32 %v28, %v42
  %v45 = vmul.f32 %v29, %v43
  %v47 = vlaneseq
  %v48 = vshrl.u32 %v47, 7
  %v49 = vsub.s32 0, %v48
  %v50 = vrot.slane %v16, %v49
  %v52 = vmul.f32 %v44, %v50
  %v53 = vmul.f32 %v45, %v50
  %v55 = vlaneseq
  %v56 = vshrl.u32 %v55, 7
  %v57 = vsub.s32 0, %v56
  %v58 = vrot.slane %v17, %v57
  %v60 = vadd.f32 %v52, %v58
  %v61 = vadd.f32 %v53, %v58
  %62 = vst.msk [vmem:[%s3] sm:$0xff] %vm18, %v60
  %63 = vst.msk [vmem:[%s3 + $0x8] sm:$0xff] %vm18, %v61
  // Predicated region
  $region14: #{bert_classifier_forward.3} parent=0 // pred_check
    _
  $region15: #{bert_classifier_forward.3} parent=0 // pred_check_branch
    %65 = sbr.rel (0) target = $region17
  $region16: #{bert_classifier_forward.3} parent=0 // pred_region
    _
  $region17: #{bert_classifier_forward.3} parent=0 // pred_fallthru
    _
  // Predicated region
  $region18: #{bert_classifier_forward.3} parent=0 // pred_check
    _
  $region19: #{bert_classifier_forward.3} parent=0 // pred_check_branch
    %67 = sbr.rel (0) target = $region21
  $region20: #{bert_classifier_forward.3} parent=0 // pred_region
    _
  $region21: #{bert_classifier_forward.3} parent=0 // pred_fallthru
    _

// kernel: bert_classifier_forward.5
$region0: #{bert_classifier_forward.5}
  #allocation0 [shape = 'u32[]', space=smem, size = 0x4, offset = 0x4, fixed_abs, tag = 'smem constant byte address 0x4 - core index']
  #allocation1 [shape = 'u32[144,128]{1,0:T(1,128)}', space=vmem, size = 0x12000, scoped, tag = 'internal scratch']
  %s0 = inlined_call_operand.vmem [shape: f32[2,32], index: 0, kind: input, shape index: {}]
  %s1 = inlined_call_operand.vmem [shape: bf16[32,32], index: 1, kind: input, shape index: {}]
  %s2 = inlined_call_operand.vmem [shape: f32[1,32], index: 2, kind: input, shape index: {}]
  %s3 = inlined_call_operand.vmem [shape: bf16[32,128], index: 3, kind: input, shape index: {}]
  %s4 = inlined_call_operand.vmem [shape: f32[1,128], index: 4, kind: input, shape index: {}]
  %s5 = inlined_call_operand.hbm [shape: f32[2,128], index: 5, kind: output, shape index: {}]
  %s6 = sld [smem:[#allocation0]]
  $region30: #{bert_classifier_forward.5} parent=0
    _
  %s8 = ssub.s32 1, %s6
  %s9 = scalar_select 0, %s8, %s6
  $region1: #{bert_classifier_forward.5} parent=0
    #allocation2 [shape = 'u8[1024]{0}', space=vmem, size = 0x400, scoped, tag = 'output window, operand 0, single buffered']
    #allocation3 [shape = 's32[1]{0}', space=sflag, size = 0x4, scoped, tag = 'scoped memory for bert_classifier_forward.5']
    %10 = vsyncpa [#allocation3], 0
    // Predicated region
    $region2: #{bert_classifier_forward.5} parent=1 // pred_check
      _
    $region3: #{bert_classifier_forward.5} parent=1 // pred_check_branch
      %12 = sbr.rel (0) target = $region5
    $region4: #{bert_classifier_forward.5} parent=1 // pred_region
      _
    $region5: #{bert_classifier_forward.5} parent=1 // pred_fallthru
      _
    // Predicated region
    $region6: #{bert_classifier_forward.5} parent=1 // pred_check
      _
    $region7: #{bert_classifier_forward.5} parent=1 // pred_check_branch
      %14 = sbr.rel (0) target = $region9
    $region8: #{bert_classifier_forward.5} parent=1 // pred_region
      _
    $region9: #{bert_classifier_forward.5} parent=1 // pred_fallthru
      _
    // Predicated region
    $region10: #{bert_classifier_forward.5} parent=1 // pred_check
      _
    $region11: #{bert_classifier_forward.5} parent=1 // pred_check_branch
      %16 = sbr.rel (0) target = $region13
    $region12: #{bert_classifier_forward.5} parent=1 // pred_region
      _
    $region13: #{bert_classifier_forward.5} parent=1 // pred_fallthru
      _
    // Predicated region
    $region14: #{bert_classifier_forward.5} parent=1 // pred_check
      _
    $region15: #{bert_classifier_forward.5} parent=1 // pred_check_branch
      %18 = sbr.rel (0) target = $region17
    $region16: #{bert_classifier_forward.5} parent=1 // pred_region
      _
    $region17: #{bert_classifier_forward.5} parent=1 // pred_fallthru
      _
    // Predicated region
    $region18: #{bert_classifier_forward.5} parent=1 // pred_check
      _
    $region19: #{bert_classifier_forward.5} parent=1 // pred_check_branch
      %20 = sbr.rel (0) target = $region21
    $region20: #{bert_classifier_forward.5} parent=1 // pred_region
      _
    $region21: #{bert_classifier_forward.5} parent=1 // pred_fallthru
      _
    %v22 = vld [vmem:[%s0] sm:$0x3]
    %v23 = vpack.c.bf16 %v22, %v22
    %v24 = vld [vmem:[%s1] sm:$0xf]
    %v25 = vld [vmem:[%s1 + $0x4] sm:$0xf]
    %v26 = vld [vmem:[%s1 + $0x8] sm:$0xf]
    %v27 = vld [vmem:[%s1 + $0xc] sm:$0xf]
    %v28 = vld [vmem:[%s2] sm:$0x1]
    %v30 = vlaneseq
    %v31 = vshrl.u32 %v30, 7
    %v32 = vsub.s32 0, %v31
    %v33 = vrot.slane %v28, %v32
    %v39 = vunpack.c.l.b16 %v24
    %v40 = vunpack.c.l.b16 %v25
    %v41 = vunpack.c.l.b16 %v26
    %v42 = vunpack.c.l.b16 %v27
    %v43 = vpack.c.b16 %v40, %v39
    %v44 = vpack.c.b16 %v42, %v41
    %vm47 = vcmask 261120
    %v49 = vsel %vm47, %v23, 0
    %51 = vmatprep.subr.bf16.mxu0 0
    %52 = vmatpush1.bf16.msra.mxu0 %v43
    %53 = vmatprep.subr.bf16.mxu0 0
    %54 = vmatpush1.bf16.msra.mxu0 %v44
    %55 = vmatprep.subr.bf16.mxu0 0
    %56 = vmatpush1.bf16.msra.mxu0 0
    %57 = vmatprep.subr.bf16.mxu0 0
    %58 = vmatpush1.bf16.msra.mxu0 0
    %59 = vmatprep.subr.bf16.mxu0 0
    %60 = vmatpush1.bf16.msra.mxu0 0
    %61 = vmatprep.subr.bf16.mxu0 0
    %62 = vmatpush1.bf16.msra.mxu0 0
    %63 = vmatprep.subr.bf16.mxu0 0
    %64 = vmatpush1.bf16.msra.mxu0 0
    %65 = vmatprep.subr.bf16.mxu0 0
    %66 = vmatpush1.bf16.msra.mxu0 0
    %67 = vmatprep.subr.bf16.mxu0 0
    %68 = vmatpush1.bf16.msra.mxu0 0
    %69 = vmatprep.subr.bf16.mxu0 0
    %70 = vmatpush1.bf16.msra.mxu0 0
    %71 = vmatprep.subr.bf16.mxu0 0
    %72 = vmatpush1.bf16.msra.mxu0 0
    %73 = vmatprep.subr.bf16.mxu0 0
    %74 = vmatpush1.bf16.msra.mxu0 0
    %75 = vmatprep.subr.bf16.mxu0 0
    %76 = vmatpush1.bf16.msra.mxu0 0
    %77 = vmatprep.subr.bf16.mxu0 0
    %78 = vmatpush1.bf16.msra.mxu0 0
    %79 = vmatprep.subr.bf16.mxu0 0
    %80 = vmatpush1.bf16.msra.mxu0 0
    %81 = vmatprep.subr.bf16.mxu0 0
    %82 = vmatpush1.bf16.msra.mxu0 0
    %83 = vmatprep.mubr.bf16.mxu0 0
    %84 = vmatmul.mubr.bf16.gmra.mrb[0].mxu0 %v49
    %v85 = vpop.f32.mrb[0].mxu0
    %v86 = vadd.f32 %v33, %v85
    %v87 = vpop.f32.mrb[0].mxu0
    %v88 = vpop.f32.mrb[0].mxu0
    %v89 = vpop.f32.mrb[0].mxu0
    %90 = vdwg.mxu0
    %v91 = vtanh.pop %v86
    %v92 = vpack.c.bf16 %v91, %v91
    %v93 = vld [vmem:[%s3] sm:$0xf]
    %v94 = vld [vmem:[%s3 + $0x4] sm:$0xf]
    %v95 = vld [vmem:[%s3 + $0x8] sm:$0xf]
    %v96 = vld [vmem:[%s3 + $0xc] sm:$0xf]
    %v97 = vld [vmem:[%s4] sm:$0x1]
    %v99 = vlaneseq
    %v100 = vshrl.u32 %v99, 7
    %v101 = vsub.s32 0, %v100
    %v102 = vrot.slane %v97, %v101
    %v108 = vunpack.c.l.b16 %v93
    %v109 = vunpack.c.l.b16 %v94
    %v110 = vunpack.c.l.b16 %v95
    %v111 = vunpack.c.l.b16 %v96
    %v112 = vpack.c.b16 %v109, %v108
    %v113 = vpack.c.b16 %v111, %v110
    %v117 = vsel %vm47, %v92, 0
    %119 = vmatprep.subr.bf16.mxu0 0
    %120 = vmatpush1.bf16.msra.mxu0 %v112
    %121 = vmatprep.subr.bf16.mxu0 0
    %122 = vmatpush1.bf16.msra.mxu0 %v113
    %123 = vmatprep.subr.bf16.mxu0 0
    %124 = vmatpush1.bf16.msra.mxu0 0
    %125 = vmatprep.subr.bf16.mxu0 0
    %126 = vmatpush1.bf16.msra.mxu0 0
    %127 = vmatprep.subr.bf16.mxu0 0
    %128 = vmatpush1.bf16.msra.mxu0 0
    %129 = vmatprep.subr.bf16.mxu0 0
    %130 = vmatpush1.bf16.msra.mxu0 0
    %131 = vmatprep.subr.bf16.mxu0 0
    %132 = vmatpush1.bf16.msra.mxu0 0
    %133 = vmatprep.subr.bf16.mxu0 0
    %134 = vmatpush1.bf16.msra.mxu0 0
    %135 = vmatprep.subr.bf16.mxu0 0
    %136 = vmatpush1.bf16.msra.mxu0 0
    %137 = vmatprep.subr.bf16.mxu0 0
    %138 = vmatpush1.bf16.msra.mxu0 0
    %139 = vmatprep.subr.bf16.mxu0 0
    %140 = vmatpush1.bf16.msra.mxu0 0
    %141 = vmatprep.subr.bf16.mxu0 0
    %142 = vmatpush1.bf16.msra.mxu0 0
    %143 = vmatprep.subr.bf16.mxu0 0
    %144 = vmatpush1.bf16.msra.mxu0 0
    %145 = vmatprep.subr.bf16.mxu0 0
    %146 = vmatpush1.bf16.msra.mxu0 0
    %147 = vmatprep.subr.bf16.mxu0 0
    %148 = vmatpush1.bf16.msra.mxu0 0
    %149 = vmatprep.subr.bf16.mxu0 0
    %150 = vmatpush1.bf16.msra.mxu0 0
    %151 = vmatprep.mubr.bf16.mxu0 0
    %152 = vmatmul.mubr.bf16.gmra.mrb[0].mxu0 %v117
    %v153 = vpop.f32.mrb[0].mxu0
    %v154 = vadd.f32 %v102, %v153
    %v155 = vpop.f32.mrb[0].mxu0
    %v156 = vpop.f32.mrb[0].mxu0
    %v157 = vpop.f32.mrb[0].mxu0
    %158 = vdwg.mxu0
    %v159 = vmax.f32 %v154, 0.0
    %160 = vst [vmem:[#allocation2] sm:$0x3] %v159
    // Predicated region
    $region22: #{bert_classifier_forward.5} parent=1 // pred_check
      _
    $region23: #{bert_classifier_forward.5} parent=1 // pred_check_branch
      %162 = sbr.rel (0) target = $region25
    $region24: #{bert_classifier_forward.5} parent=1 // pred_region
      %s164 = ssub.s32 32, 32
      %165 = vsyncadd [#allocation3], %s164
      %s167 = sshll.u32 [#allocation2], 4
      %s168 = int_to_ptr.vmem [resolvable:$true] %s167
      %170 = dma.vmem_to_hbm [thread:$0]  %s168, 32, %s5, [#allocation3]
    $region25: #{bert_classifier_forward.5} parent=1 // pred_fallthru
      _
    // Predicated region
    $region26: #{bert_classifier_forward.5} parent=1 // pred_check
      _
    $region27: #{bert_classifier_forward.5} parent=1 // pred_check_branch
      %172 = sbr.rel (0) target = $region29
    $region28: #{bert_classifier_forward.5} parent=1 // pred_region
      %173 = dma.done [#allocation3], 32
    $region29: #{bert_classifier_forward.5} parent=1 // pred_fallthru
      _
    %174 = vsyncpa [#allocation3], 1

// kernel: bert_classifier_forward.4
$region0: #{bert_classifier_forward.4}
  #allocation0 [shape = 'u32[]', space=smem, size = 0x4, offset = 0x4, fixed_abs, tag = 'smem constant byte address 0x4 - core index']
  #allocation1 [shape = 'u32[144,128]{1,0:T(1,128)}', space=vmem, size = 0x12000, scoped, tag = 'internal scratch']
  %s0 = inlined_call_operand.vmem [shape: f32[16,32], index: 0, kind: input, shape index: {}]
  %s1 = inlined_call_operand.vmem [shape: f32[2,8], index: 1, kind: input, shape index: {}]
  %s2 = inlined_call_operand.vmem [shape: bf16[2,32,96], index: 2, kind: input, shape index: {}]
  %s3 = inlined_call_operand.vmem [shape: f32[2,1,96], index: 3, kind: input, shape index: {}]
  %s4 = inlined_call_operand.vmem [shape: bf16[2,32,32], index: 4, kind: input, shape index: {}]
  %s5 = inlined_call_operand.vmem [shape: f32[2,1,32], index: 5, kind: input, shape index: {}]
  %s6 = inlined_call_operand.vmem [shape: f32[2,1,32], index: 6, kind: input, shape index: {}]
  %s7 = inlined_call_operand.vmem [shape: f32[2,1,32], index: 7, kind: input, shape index: {}]
  %s8 = inlined_call_operand.vmem [shape: bf16[2,32,64], index: 8, kind: input, shape index: {}]
  %s9 = inlined_call_operand.vmem [shape: f32[2,1,64], index: 9, kind: input, shape index: {}]
  %s10 = inlined_call_operand.vmem [shape: bf16[2,64,32], index: 10, kind: input, shape index: {}]
  %s11 = inlined_call_operand.vmem [shape: f32[2,1,32], index: 11, kind: input, shape index: {}]
  %s12 = inlined_call_operand.vmem [shape: f32[2,1,32], index: 12, kind: input, shape index: {}]
  %s13 = inlined_call_operand.vmem [shape: f32[2,1,32], index: 13, kind: input, shape index: {}]
  %s14 = inlined_call_operand.vmem [shape: f32[16,32], index: 14, kind: output, shape index: {}]
  %s15 = sld [smem:[#allocation0]]
  $region93: #{bert_classifier_forward.4} parent=0
    _
  %s17 = ssub.s32 1, %s15
  %s18 = scalar_select 0, %s17, %s15
  loop: start=0, step=1, limit=4
  $region2: #{bert_classifier_forward.4} parent=0 // loop_pre_header
    _
  $region3: #{bert_classifier_forward.4} parent=0 // loop_header
    %s20 = sphi 0, %s24
    %p21 = scmp.ge.s32.totalorder %s20, 4
    %s28 = sphi 0, %s28
    %s30 = sphi 0, %s28
    %s31 = sphi 0, %s30
    %s45 = sphi 0, %s31
    %s49 = sphi 0, %s49
    %s51 = sphi 0, %s49
    %s52 = sphi 0, %s51
    %s66 = sphi 0, %s52
    %s72 = sphi 0, %s74
    %s75 = sphi 0, %s72
    %s76 = sphi 0, %s75
    %s92 = sphi 0, %s76
    %s98 = sphi 0, %s100
    %s101 = sphi 0, %s98
    %s102 = sphi 0, %s101
    %s118 = sphi 0, %s102
    %s124 = sphi 0, %s126
    %s127 = sphi 0, %s124
    %s128 = sphi 0, %s127
    %s144 = sphi 0, %s128
    %s150 = sphi 0, %s152
    %s153 = sphi 0, %s150
    %s154 = sphi 0, %s153
    %s170 = sphi 0, %s154
    %s176 = sphi 0, %s178
    %s179 = sphi 0, %s176
    %s180 = sphi 0, %s179
    %s196 = sphi 0, %s180
    %s202 = sphi 0, %s204
    %s205 = sphi 0, %s202
    %s206 = sphi 0, %s205
    %s222 = sphi 0, %s206
    %s228 = sphi 0, %s230
    %s231 = sphi 0, %s228
    %s232 = sphi 0, %s231
    %s248 = sphi 0, %s232
    %s254 = sphi 0, %s256
    %s257 = sphi 0, %s254
    %s258 = sphi 0, %s257
    %s274 = sphi 0, %s258
    %s280 = sphi 0, %s282
    %s283 = sphi 0, %s280
    %s284 = sphi 0, %s283
    %s300 = sphi 0, %s284
    %s306 = sphi 0, %s308
    %s309 = sphi 0, %s306
    %s310 = sphi 0, %s309
    %s326 = sphi 0, %s310
    %s332 = sphi 0, %s334
    %s335 = sphi 0, %s332
    %s336 = sphi 0, %s335
    %s352 = sphi 0, %s336
    %s358 = sphi 0, %s360
    %s361 = sphi 0, %s358
    %s362 = sphi 0, %s361
    %s378 = sphi 0, %s362
    %s382 = sphi 0, %s382
    %s384 = sphi 0, %s382
    %s385 = sphi 0, %s384
    %s399 = sphi 0, %s385
  $region4: #{bert_classifier_forward.4} parent=0 // loop_header_branch
    %23 = sbr.rel (%p21) target = $region8
  $region5: #{bert_classifier_forward.4} parent=0 // loop_body
    %s25 = ssub.s32 %s20, 1
    %s26 = ssub.s32 %s20, 2
    %s27 = sadd.s32 %s20, 1
    %s29 = sadd.s32 %s28, 1
    %p32 = scmp.eq.s32.totalorder %s20, 1
    %p33 = scmp.ne.s32.totalorder %s28, %s30
    %p34 = scmp.eq.s32.totalorder %s20, 0
    %p35 = por %p33, %p34
    %p36 = scmp.ne.s32.totalorder %s28, %s30
    %p37 = scmp.eq.s32.totalorder %s25, 1
    %p38 = por %p36, %p37
    %p39 = scmp.ne.s32.totalorder %s30, %s31
    %p40 = scmp.eq.s32.totalorder %s25, 0
    %p41 = por %p39, %p40
    %p42 = scmp.ne.s32.totalorder %s30, %s31
    %p43 = scmp.eq.s32.totalorder %s26, 1
    %p44 = por %p42, %p43
    %p46 = scmp.ne.s32.totalorder %s31, %s45
    %p47 = scmp.eq.s32.totalorder %s26, 0
    %p48 = por %p46, %p47
    %s50 = sadd.s32 %s49, 1
    %p53 = scmp.eq.s32.totalorder %s20, 1
    %p54 = scmp.ne.s32.totalorder %s49, %s51
    %p55 = scmp.eq.s32.totalorder %s20, 0
    %p56 = por %p54, %p55
    %p57 = scmp.ne.s32.totalorder %s49, %s51
    %p58 = scmp.eq.s32.totalorder %s25, 1
    %p59 = por %p57, %p58
    %p60 = scmp.ne.s32.totalorder %s51, %s52
    %p61 = scmp.eq.s32.totalorder %s25, 0
    %p62 = por %p60, %p61
    %p63 = scmp.ne.s32.totalorder %s51, %s52
    %p64 = scmp.eq.s32.totalorder %s26, 1
    %p65 = por %p63, %p64
    %p67 = scmp.ne.s32.totalorder %s52, %s66
    %p68 = scmp.eq.s32.totalorder %s26, 0
    %p69 = por %p67, %p68
    %s70 = ssub.s32 %s20, %s27
    %p71 = scmp.eq.s32.totalorder %s70, 0
    %s73 = sadd.s32 %s72, 1
    %s74 = scalar_select %p71, %s72, %s73
    %p77 = pneg %p71
    %p78 = scmp.eq.s32.totalorder %s20, 1
    %p79 = por %p77, %p78
    %p80 = scmp.ne.s32.totalorder %s72, %s75
    %p81 = scmp.eq.s32.totalorder %s20, 0
    %p82 = por %p80, %p81
    %p83 = scmp.ne.s32.totalorder %s72, %s75
    %p84 = scmp.eq.s32.totalorder %s25, 1
    %p85 = por %p83, %p84
    %p86 = scmp.ne.s32.totalorder %s75, %s76
    %p87 = scmp.eq.s32.totalorder %s25, 0
    %p88 = por %p86, %p87
    %p89 = scmp.ne.s32.totalorder %s75, %s76
    %p90 = scmp.eq.s32.totalorder %s26, 1
    %p91 = por %p89, %p90
    %p93 = scmp.ne.s32.totalorder %s76, %s92
    %p94 = scmp.eq.s32.totalorder %s26, 0
    %p95 = por %p93, %p94
    %s96 = ssub.s32 %s20, %s27
    %p97 = scmp.eq.s32.totalorder %s96, 0
    %s99 = sadd.s32 %s98, 1
    %s100 = scalar_select %p97, %s98, %s99
    %p103 = pneg %p97
    %p104 = scmp.eq.s32.totalorder %s20, 1
    %p105 = por %p103, %p104
    %p106 = scmp.ne.s32.totalorder %s98, %s101
    %p107 = scmp.eq.s32.totalorder %s20, 0
    %p108 = por %p106, %p107
    %p109 = scmp.ne.s32.totalorder %s98, %s101
    %p110 = scmp.eq.s32.totalorder %s25, 1
    %p111 = por %p109, %p110
    %p112 = scmp.ne.s32.totalorder %s101, %s102
    %p113 = scmp.eq.s32.totalorder %s25, 0
    %p114 = por %p112, %p113
    %p115 = scmp.ne.s32.totalorder %s101, %s102
    %p116 = scmp.eq.s32.totalorder %s26, 1
    %p117 = por %p115, %p116
    %p119 = scmp.ne.s32.totalorder %s102, %s118
    %p120 = scmp.eq.s32.totalorder %s26, 0
    %p121 = por %p119, %p120
    %s122 = ssub.s32 %s20, %s27
    %p123 = scmp.eq.s32.totalorder %s122, 0
    %s125 = sadd.s32 %s124, 1
    %s126 = scalar_select %p123, %s124, %s125
    %p129 = pneg %p123
    %p130 = scmp.eq.s32.totalorder %s20, 1
    %p131 = por %p129, %p130
    %p132 = scmp.ne.s32.totalorder %s124, %s127
    %p133 = scmp.eq.s32.totalorder %s20, 0
    %p134 = por %p132, %p133
    %p135 = scmp.ne.s32.totalorder %s124, %s127
    %p136 = scmp.eq.s32.totalorder %s25, 1
    %p137 = por %p135, %p136
    %p138 = scmp.ne.s32.totalorder %s127, %s128
    %p139 = scmp.eq.s32.totalorder %s25, 0
    %p140 = por %p138, %p139
    %p141 = scmp.ne.s32.totalorder %s127, %s128
    %p142 = scmp.eq.s32.totalorder %s26, 1
    %p143 = por %p141, %p142
    %p145 = scmp.ne.s32.totalorder %s128, %s144
    %p146 = scmp.eq.s32.totalorder %s26, 0
    %p147 = por %p145, %p146
    %s148 = ssub.s32 %s20, %s27
    %p149 = scmp.eq.s32.totalorder %s148, 0
    %s151 = sadd.s32 %s150, 1
    %s152 = scalar_select %p149, %s150, %s151
    %p155 = pneg %p149
    %p156 = scmp.eq.s32.totalorder %s20, 1
    %p157 = por %p155, %p156
    %p158 = scmp.ne.s32.totalorder %s150, %s153
    %p159 = scmp.eq.s32.totalorder %s20, 0
    %p160 = por %p158, %p159
    %p161 = scmp.ne.s32.totalorder %s150, %s153
    %p162 = scmp.eq.s32.totalorder %s25, 1
    %p163 = por %p161, %p162
    %p164 = scmp.ne.s32.totalorder %s153, %s154
    %p165 = scmp.eq.s32.totalorder %s25, 0
    %p166 = por %p164, %p165
    %p167 = scmp.ne.s32.totalorder %s153, %s154
    %p168 = scmp.eq.s32.totalorder %s26, 1
    %p169 = por %p167, %p168
    %p171 = scmp.ne.s32.totalorder %s154, %s170
    %p172 = scmp.eq.s32.totalorder %s26, 0
    %p173 = por %p171, %p172
    %s174 = ssub.s32 %s20, %s27
    %p175 = scmp.eq.s32.totalorder %s174, 0
    %s177 = sadd.s32 %s176, 1
    %s178 = scalar_select %p175, %s176, %s177
    %p181 = pneg %p175
    %p182 = scmp.eq.s32.totalorder %s20, 1
    %p183 = por %p181, %p182
    %p184 = scmp.ne.s32.totalorder %s176, %s179
    %p185 = scmp.eq.s32.totalorder %s20, 0
    %p186 = por %p184, %p185
    %p187 = scmp.ne.s32.totalorder %s176, %s179
    %p188 = scmp.eq.s32.totalorder %s25, 1
    %p189 = por %p187, %p188
    %p190 = scmp.ne.s32.totalorder %s179, %s180
    %p191 = scmp.eq.s32.totalorder %s25, 0
    %p192 = por %p190, %p191
    %p193 = scmp.ne.s32.totalorder %s179, %s180
    %p194 = scmp.eq.s32.totalorder %s26, 1
    %p195 = por %p193, %p194
    %p197 = scmp.ne.s32.totalorder %s180, %s196
    %p198 = scmp.eq.s32.totalorder %s26, 0
    %p199 = por %p197, %p198
    %s200 = ssub.s32 %s20, %s27
    %p201 = scmp.eq.s32.totalorder %s200, 0
    %s203 = sadd.s32 %s202, 1
    %s204 = scalar_select %p201, %s202, %s203
    %p207 = pneg %p201
    %p208 = scmp.eq.s32.totalorder %s20, 1
    %p209 = por %p207, %p208
    %p210 = scmp.ne.s32.totalorder %s202, %s205
    %p211 = scmp.eq.s32.totalorder %s20, 0
    %p212 = por %p210, %p211
    %p213 = scmp.ne.s32.totalorder %s202, %s205
    %p214 = scmp.eq.s32.totalorder %s25, 1
    %p215 = por %p213, %p214
    %p216 = scmp.ne.s32.totalorder %s205, %s206
    %p217 = scmp.eq.s32.totalorder %s25, 0
    %p218 = por %p216, %p217
    %p219 = scmp.ne.s32.totalorder %s205, %s206
    %p220 = scmp.eq.s32.totalorder %s26, 1
    %p221 = por %p219, %p220
    %p223 = scmp.ne.s32.totalorder %s206, %s222
    %p224 = scmp.eq.s32.totalorder %s26, 0
    %p225 = por %p223, %p224
    %s226 = ssub.s32 %s20, %s27
    %p227 = scmp.eq.s32.totalorder %s226, 0
    %s229 = sadd.s32 %s228, 1
    %s230 = scalar_select %p227, %s228, %s229
    %p233 = pneg %p227
    %p234 = scmp.eq.s32.totalorder %s20, 1
    %p235 = por %p233, %p234
    %p236 = scmp.ne.s32.totalorder %s228, %s231
    %p237 = scmp.eq.s32.totalorder %s20, 0
    %p238 = por %p236, %p237
    %p239 = scmp.ne.s32.totalorder %s228, %s231
    %p240 = scmp.eq.s32.totalorder %s25, 1
    %p241 = por %p239, %p240
    %p242 = scmp.ne.s32.totalorder %s231, %s232
    %p243 = scmp.eq.s32.totalorder %s25, 0
    %p244 = por %p242, %p243
    %p245 = scmp.ne.s32.totalorder %s231, %s232
    %p246 = scmp.eq.s32.totalorder %s26, 1
    %p247 = por %p245, %p246
    %p249 = scmp.ne.s32.totalorder %s232, %s248
    %p250 = scmp.eq.s32.totalorder %s26, 0
    %p251 = por %p249, %p250
    %s252 = ssub.s32 %s20, %s27
    %p253 = scmp.eq.s32.totalorder %s252, 0
    %s255 = sadd.s32 %s254, 1
    %s256 = scalar_select %p253, %s254, %s255
    %p259 = pneg %p253
    %p260 = scmp.eq.s32.totalorder %s20, 1
    %p261 = por %p259, %p260
    %p262 = scmp.ne.s32.totalorder %s254, %s257
    %p263 = scmp.eq.s32.totalorder %s20, 0
    %p264 = por %p262, %p263
    %p265 = scmp.ne.s32.totalorder %s254, %s257
    %p266 = scmp.eq.s32.totalorder %s25, 1
    %p267 = por %p265, %p266
    %p268 = scmp.ne.s32.totalorder %s257, %s258
    %p269 = scmp.eq.s32.totalorder %s25, 0
    %p270 = por %p268, %p269
    %p271 = scmp.ne.s32.totalorder %s257, %s258
    %p272 = scmp.eq.s32.totalorder %s26, 1
    %p273 = por %p271, %p272
    %p275 = scmp.ne.s32.totalorder %s258, %s274
    %p276 = scmp.eq.s32.totalorder %s26, 0
    %p277 = por %p275, %p276
    %s278 = ssub.s32 %s20, %s27
    %p279 = scmp.eq.s32.totalorder %s278, 0
    %s281 = sadd.s32 %s280, 1
    %s282 = scalar_select %p279, %s280, %s281
    %p285 = pneg %p279
    %p286 = scmp.eq.s32.totalorder %s20, 1
    %p287 = por %p285, %p286
    %p288 = scmp.ne.s32.totalorder %s280, %s283
    %p289 = scmp.eq.s32.totalorder %s20, 0
    %p290 = por %p288, %p289
    %p291 = scmp.ne.s32.totalorder %s280, %s283
    %p292 = scmp.eq.s32.totalorder %s25, 1
    %p293 = por %p291, %p292
    %p294 = scmp.ne.s32.totalorder %s283, %s284
    %p295 = scmp.eq.s32.totalorder %s25, 0
    %p296 = por %p294, %p295
    %p297 = scmp.ne.s32.totalorder %s283, %s284
    %p298 = scmp.eq.s32.totalorder %s26, 1
    %p299 = por %p297, %p298
    %p301 = scmp.ne.s32.totalorder %s284, %s300
    %p302 = scmp.eq.s32.totalorder %s26, 0
    %p303 = por %p301, %p302
    %s304 = ssub.s32 %s20, %s27
    %p305 = scmp.eq.s32.totalorder %s304, 0
    %s307 = sadd.s32 %s306, 1
    %s308 = scalar_select %p305, %s306, %s307
    %p311 = pneg %p305
    %p312 = scmp.eq.s32.totalorder %s20, 1
    %p313 = por %p311, %p312
    %p314 = scmp.ne.s32.totalorder %s306, %s309
    %p315 = scmp.eq.s32.totalorder %s20, 0
    %p316 = por %p314, %p315
    %p317 = scmp.ne.s32.totalorder %s306, %s309
    %p318 = scmp.eq.s32.totalorder %s25, 1
    %p319 = por %p317, %p318
    %p320 = scmp.ne.s32.totalorder %s309, %s310
    %p321 = scmp.eq.s32.totalorder %s25, 0
    %p322 = por %p320, %p321
    %p323 = scmp.ne.s32.totalorder %s309, %s310
    %p324 = scmp.eq.s32.totalorder %s26, 1
    %p325 = por %p323, %p324
    %p327 = scmp.ne.s32.totalorder %s310, %s326
    %p328 = scmp.eq.s32.totalorder %s26, 0
    %p329 = por %p327, %p328
    %s330 = ssub.s32 %s20, %s27
    %p331 = scmp.eq.s32.totalorder %s330, 0
    %s333 = sadd.s32 %s332, 1
    %s334 = scalar_select %p331, %s332, %s333
    %p337 = pneg %p331
    %p338 = scmp.eq.s32.totalorder %s20, 1
    %p339 = por %p337, %p338
    %p340 = scmp.ne.s32.totalorder %s332, %s335
    %p341 = scmp.eq.s32.totalorder %s20, 0
    %p342 = por %p340, %p341
    %p343 = scmp.ne.s32.totalorder %s332, %s335
    %p344 = scmp.eq.s32.totalorder %s25, 1
    %p345 = por %p343, %p344
    %p346 = scmp.ne.s32.totalorder %s335, %s336
    %p347 = scmp.eq.s32.totalorder %s25, 0
    %p348 = por %p346, %p347
    %p349 = scmp.ne.s32.totalorder %s335, %s336
    %p350 = scmp.eq.s32.totalorder %s26, 1
    %p351 = por %p349, %p350
    %p353 = scmp.ne.s32.totalorder %s336, %s352
    %p354 = scmp.eq.s32.totalorder %s26, 0
    %p355 = por %p353, %p354
    %s356 = ssub.s32 %s20, %s27
    %p357 = scmp.eq.s32.totalorder %s356, 0
    %s359 = sadd.s32 %s358, 1
    %s360 = scalar_select %p357, %s358, %s359
    %p363 = pneg %p357
    %p364 = scmp.eq.s32.totalorder %s20, 1
    %p365 = por %p363, %p364
    %p366 = scmp.ne.s32.totalorder %s358, %s361
    %p367 = scmp.eq.s32.totalorder %s20, 0
    %p368 = por %p366, %p367
    %p369 = scmp.ne.s32.totalorder %s358, %s361
    %p370 = scmp.eq.s32.totalorder %s25, 1
    %p371 = por %p369, %p370
    %p372 = scmp.ne.s32.totalorder %s361, %s362
    %p373 = scmp.eq.s32.totalorder %s25, 0
    %p374 = por %p372, %p373
    %p375 = scmp.ne.s32.totalorder %s361, %s362
    %p376 = scmp.eq.s32.totalorder %s26, 1
    %p377 = por %p375, %p376
    %p379 = scmp.ne.s32.totalorder %s362, %s378
    %p380 = scmp.eq.s32.totalorder %s26, 0
    %p381 = por %p379, %p380
    %s383 = sadd.s32 %s382, 1
    %p386 = scmp.eq.s32.totalorder %s20, 1
    %p387 = scmp.ne.s32.totalorder %s382, %s384
    %p388 = scmp.eq.s32.totalorder %s20, 0
    %p389 = por %p387, %p388
    %p390 = scmp.ne.s32.totalorder %s382, %s384
    %p391 = scmp.eq.s32.totalorder %s25, 1
    %p392 = por %p390, %p391
    %p393 = scmp.ne.s32.totalorder %s384, %s385
    %p394 = scmp.eq.s32.totalorder %s25, 0
    %p395 = por %p393, %p394
    %p396 = scmp.ne.s32.totalorder %s384, %s385
    %p397 = scmp.eq.s32.totalorder %s26, 1
    %p398 = por %p396, %p397
    %p400 = scmp.ne.s32.totalorder %s385, %s399
    %p401 = scmp.eq.s32.totalorder %s26, 0
    %p402 = por %p400, %p401
    %p403 = scmp.le.s32.totalorder 1, %s20
    %p404 = scmp.lt.s32.totalorder %s20, 3
    %p405 = pnand %p403, %p404
    %p406 = pneg %p405
    // Predicated region
    $region9: #{bert_classifier_forward.4} parent=5 // pred_check
      _
    $region10: #{bert_classifier_forward.4} parent=5 // pred_check_branch
      %408 = sbr.rel (%p405) target = $region12
    $region11: #{bert_classifier_forward.4} parent=5 // pred_region
      %s409 = ssub.s32 %s20, 1
      // Predicated region
      $region13: #{bert_classifier_forward.4} parent=11 // pred_check
        %p410 = pneg %p41
      $region14: #{bert_classifier_forward.4} parent=11 // pred_check_branch
        %412 = sbr.rel (%p410) target = $region16
      $region15: #{bert_classifier_forward.4} parent=11 // pred_region
        _
      $region16: #{bert_classifier_forward.4} parent=11 // pred_fallthru
        _
      // Predicated region
      $region17: #{bert_classifier_forward.4} parent=11 // pred_check
        %p413 = pneg %p62
      $region18: #{bert_classifier_forward.4} parent=11 // pred_check_branch
        %415 = sbr.rel (%p413) target = $region20
      $region19: #{bert_classifier_forward.4} parent=11 // pred_region
        _
      $region20: #{bert_classifier_forward.4} parent=11 // pred_fallthru
        _
    $region12: #{bert_classifier_forward.4} parent=5 // pred_fallthru
      _
    %p416 = scmp.lt.s32.totalorder %s20, 2
    // Predicated region
    $region21: #{bert_classifier_forward.4} parent=5 // pred_check
      %p417 = pneg %p416
    $region22: #{bert_classifier_forward.4} parent=5 // pred_check_branch
      %419 = sbr.rel (%p417) target = $region24
    $region23: #{bert_classifier_forward.4} parent=5 // pred_region
      // Predicated region
      $region25: #{bert_classifier_forward.4} parent=23 // pred_check
        %p420 = pneg %p82
      $region26: #{bert_classifier_forward.4} parent=23 // pred_check_branch
        %422 = sbr.rel (%p420) target = $region28
      $region27: #{bert_classifier_forward.4} parent=23 // pred_region
        %p423 = scmp.lt.s32.totalorder %s20, 1
        %s424 = scalar_select %p423, %s20, 1
        %s425 = smul.addr %s424, 4
        %s426 = smul.addr %s425, 4
        %s427 = scalar_lea.vmem %s2, %s426
      $region28: #{bert_classifier_forward.4} parent=23 // pred_fallthru
        _
      // Predicated region
      $region29: #{bert_classifier_forward.4} parent=23 // pred_check
        %p428 = pneg %p108
      $region30: #{bert_classifier_forward.4} parent=23 // pred_check_branch
        %430 = sbr.rel (%p428) target = $region32
      $region31: #{bert_classifier_forward.4} parent=23 // pred_region
        %p431 = scmp.lt.s32.totalorder %s20, 1
        %s432 = scalar_select %p431, %s20, 1
        %s433 = scalar_lea.vmem %s3, %s432
      $region32: #{bert_classifier_forward.4} parent=23 // pred_fallthru
        _
      // Predicated region
      $region33: #{bert_classifier_forward.4} parent=23 // pred_check
        %p434 = pneg %p134
      $region34: #{bert_classifier_forward.4} parent=23 // pred_check_branch
        %436 = sbr.rel (%p434) target = $region36
      $region35: #{bert_classifier_forward.4} parent=23 // pred_region
        %p437 = scmp.lt.s32.totalorder %s20, 1
        %s438 = scalar_select %p437, %s20, 1
        %s439 = smul.addr %s438, 4
        %s440 = smul.addr %s439, 4
        %s441 = scalar_lea.vmem %s4, %s440
      $region36: #{bert_classifier_forward.4} parent=23 // pred_fallthru
        _
      // Predicated region
      $region37: #{bert_classifier_forward.4} parent=23 // pred_check
        %p442 = pneg %p160
      $region38: #{bert_classifier_forward.4} parent=23 // pred_check_branch
        %444 = sbr.rel (%p442) target = $region40
      $region39: #{bert_classifier_forward.4} parent=23 // pred_region
        %p445 = scmp.lt.s32.totalorder %s20, 1
        %s446 = scalar_select %p445, %s20, 1
        %s447 = scalar_lea.vmem %s5, %s446
      $region40: #{bert_classifier_forward.4} parent=23 // pred_fallthru
        _
      // Predicated region
      $region41: #{bert_classifier_forward.4} parent=23 // pred_check
        %p448 = pneg %p186
      $region42: #{bert_classifier_forward.4} parent=23 // pred_check_branch
        %450 = sbr.rel (%p448) target = $region44
      $region43: #{bert_classifier_forward.4} parent=23 // pred_region
        %p451 = scmp.lt.s32.totalorder %s20, 1
        %s452 = scalar_select %p451, %s20, 1
        %s453 = scalar_lea.vmem %s6, %s452
      $region44: #{bert_classifier_forward.4} parent=23 // pred_fallthru
        _
      // Predicated region
      $region45: #{bert_classifier_forward.4} parent=23 // pred_check
        %p454 = pneg %p212
      $region46: #{bert_classifier_forward.4} parent=23 // pred_check_branch
        %456 = sbr.rel (%p454) target = $region48
      $region47: #{bert_classifier_forward.4} parent=23 // pred_region
        %p457 = scmp.lt.s32.totalorder %s20, 1
        %s458 = scalar_select %p457, %s20, 1
        %s459 = scalar_lea.vmem %s7, %s458
      $region48: #{bert_classifier_forward.4} parent=23 // pred_fallthru
        _
      // Predicated region
      $region49: #{bert_classifier_forward.4} parent=23 // pred_check
        %p460 = pneg %p238
      $region50: #{bert_classifier_forward.4} parent=23 // pred_check_branch
        %462 = sbr.rel (%p460) target = $region52
      $region51: #{bert_classifier_forward.4} parent=23 // pred_region
        %p463 = scmp.lt.s32.totalorder %s20, 1
        %s464 = scalar_select %p463, %s20, 1
        %s465 = smul.addr %s464, 4
        %s466 = smul.addr %s465, 4
        %s467 = scalar_lea.vmem %s8, %s466
      $region52: #{bert_classifier_forward.4} parent=23 // pred_fallthru
        _
      // Predicated region
      $region53: #{bert_classifier_forward.4} parent=23 // pred_check
        %p468 = pneg %p264
      $region54: #{bert_classifier_forward.4} parent=23 // pred_check_branch
        %470 = sbr.rel (%p468) target = $region56
      $region55: #{bert_classifier_forward.4} parent=23 // pred_region
        %p471 = scmp.lt.s32.totalorder %s20, 1
        %s472 = scalar_select %p471, %s20, 1
        %s473 = scalar_lea.vmem %s9, %s472
      $region56: #{bert_classifier_forward.4} parent=23 // pred_fallthru
        _
      // Predicated region
      $region57: #{bert_classifier_forward.4} parent=23 // pred_check
        %p474 = pneg %p290
      $region58: #{bert_classifier_forward.4} parent=23 // pred_check_branch
        %476 = sbr.rel (%p474) target = $region60
      $region59: #{bert_classifier_forward.4} parent=23 // pred_region
        %p477 = scmp.lt.s32.totalorder %s20, 1
        %s478 = scalar_select %p477, %s20, 1
        %s479 = smul.addr %s478, 8
        %s480 = smul.addr %s479, 4
        %s481 = scalar_lea.vmem %s10, %s480
      $region60: #{bert_classifier_forward.4} parent=23 // pred_fallthru
        _
      // Predicated region
      $region61: #{bert_classifier_forward.4} parent=23 // pred_check
        %p482 = pneg %p316
      $region62: #{bert_classifier_forward.4} parent=23 // pred_check_branch
        %484 = sbr.rel (%p482) target = $region64
      $region63: #{bert_classifier_forward.4} parent=23 // pred_region
        %p485 = scmp.lt.s32.totalorder %s20, 1
        %s486 = scalar_select %p485, %s20, 1
        %s487 = scalar_lea.vmem %s11, %s486
      $region64: #{bert_classifier_forward.4} parent=23 // pred_fallthru
        _
      // Predicated region
      $region65: #{bert_classifier_forward.4} parent=23 // pred_check
        %p488 = pneg %p342
      $region66: #{bert_classifier_forward.4} parent=23 // pred_check_branch
        %490 = sbr.rel (%p488) target = $region68
      $region67: #{bert_classifier_forward.4} parent=23 // pred_region
        %p491 = scmp.lt.s32.totalorder %s20, 1
        %s492 = scalar_select %p491, %s20, 1
        %s493 = scalar_lea.vmem %s12, %s492
      $region68: #{bert_classifier_forward.4} parent=23 // pred_fallthru
        _
      // Predicated region
      $region69: #{bert_classifier_forward.4} parent=23 // pred_check
        %p494 = pneg %p368
      $region70: #{bert_classifier_forward.4} parent=23 // pred_check_branch
        %496 = sbr.rel (%p494) target = $region72
      $region71: #{bert_classifier_forward.4} parent=23 // pred_region
        %p497 = scmp.lt.s32.totalorder %s20, 1
        %s498 = scalar_select %p497, %s20, 1
        %s499 = scalar_lea.vmem %s13, %s498
      $region72: #{bert_classifier_forward.4} parent=23 // pred_fallthru
        _
    $region24: #{bert_classifier_forward.4} parent=5 // pred_fallthru
      _
    %p500 = scmp.le.s32.totalorder 1, %s20
    %p501 = scmp.lt.s32.totalorder %s20, 3
    %p502 = pnand %p500, %p501
    %p503 = pneg %p502
    // Predicated region
    $region73: #{bert_classifier_forward.4} parent=5 // pred_check
      _
    $region74: #{bert_classifier_forward.4} parent=5 // pred_check_branch
      %505 = sbr.rel (%p502) target = $region76
    $region75: #{bert_classifier_forward.4} parent=5 // pred_region
      %s506 = ssub.s32 %s20, 1
      %p507 = pneg %p41
      %p508 = pneg %p38
      %p509 = pneg %p62
      %p510 = pneg %p59
      %p511 = scmp.lt.s32.totalorder %s25, 1
      %s512 = scalar_select %p511, %s25, 1
      %s513 = smul.addr %s512, 4
      %s514 = smul.addr %s513, 4
      %s515 = scalar_lea.vmem %s2, %s514
      %p516 = pneg %p88
      %p517 = pneg %p85
      %p518 = scmp.lt.s32.totalorder %s25, 1
      %s519 = scalar_select %p518, %s25, 1
      %s520 = scalar_lea.vmem %s3, %s519
      %p521 = pneg %p114
      %p522 = pneg %p111
      %p523 = scmp.lt.s32.totalorder %s25, 1
      %s524 = scalar_select %p523, %s25, 1
      %s525 = smul.addr %s524, 4
      %s526 = smul.addr %s525, 4
      %s527 = scalar_lea.vmem %s4, %s526
      %p528 = pneg %p140
      %p529 = pneg %p137
      %p530 = scmp.lt.s32.totalorder %s25, 1
      %s531 = scalar_select %p530, %s25, 1
      %s532 = scalar_lea.vmem %s5, %s531
      %p533 = pneg %p166
      %p534 = pneg %p163
      %p535 = scmp.lt.s32.totalorder %s25, 1
      %s536 = scalar_select %p535, %s25, 1
      %s537 = scalar_lea.vmem %s6, %s536
      %p538 = pneg %p192
      %p539 = pneg %p189
      %p540 = scmp.lt.s32.totalorder %s25, 1
      %s541 = scalar_select %p540, %s25, 1
      %s542 = scalar_lea.vmem %s7, %s541
      %p543 = pneg %p218
      %p544 = pneg %p215
      %p545 = scmp.lt.s32.totalorder %s25, 1
      %s546 = scalar_select %p545, %s25, 1
      %s547 = smul.addr %s546, 4
      %s548 = smul.addr %s547, 4
      %s549 = scalar_lea.vmem %s8, %s548
      %p550 = pneg %p244
      %p551 = pneg %p241
      %p552 = scmp.lt.s32.totalorder %s25, 1
      %s553 = scalar_select %p552, %s25, 1
      %s554 = scalar_lea.vmem %s9, %s553
      %p555 = pneg %p270
      %p556 = pneg %p267
      %p557 = scmp.lt.s32.totalorder %s25, 1
      %s558 = scalar_select %p557, %s25, 1
      %s559 = smul.addr %s558, 8
      %s560 = smul.addr %s559, 4
      %s561 = scalar_lea.vmem %s10, %s560
      %p562 = pneg %p296
      %p563 = pneg %p293
      %p564 = scmp.lt.s32.totalorder %s25, 1
      %s565 = scalar_select %p564, %s25, 1
      %s566 = scalar_lea.vmem %s11, %s565
      %p567 = pneg %p322
      %p568 = pneg %p319
      %p569 = scmp.lt.s32.totalorder %s25, 1
      %s570 = scalar_select %p569, %s25, 1
      %s571 = scalar_lea.vmem %s12, %s570
      %p572 = pneg %p348
      %p573 = pneg %p345
      %p574 = scmp.lt.s32.totalorder %s25, 1
      %s575 = scalar_select %p574, %s25, 1
      %s576 = scalar_lea.vmem %s13, %s575
      %p577 = pneg %p374
      %p578 = pneg %p371
      %p579 = pneg %p395
      %p580 = pneg %p392
      %p581 = scmp.lt.s32.totalorder %s25, 1
      %s582 = scalar_select %p581, %s25, 1
      %s583 = smul.addr %s582, 4
      %s584 = smul.addr %s583, 4
      %s585 = scalar_lea.vmem %s2, %s584
      %p586 = scmp.lt.s32.totalorder %s25, 1
      %s587 = scalar_select %p586, %s25, 1
      %s588 = scalar_lea.vmem %s3, %s587
      %p589 = scmp.lt.s32.totalorder %s25, 1
      %s590 = scalar_select %p589, %s25, 1
      %s591 = smul.addr %s590, 4
      %s592 = smul.addr %s591, 4
      %s593 = scalar_lea.vmem %s4, %s592
      %p594 = scmp.lt.s32.totalorder %s25, 1
      %s595 = scalar_select %p594, %s25, 1
      %s596 = scalar_lea.vmem %s5, %s595
      %p597 = scmp.lt.s32.totalorder %s25, 1
      %s598 = scalar_select %p597, %s25, 1
      %s599 = scalar_lea.vmem %s6, %s598
      %p600 = scmp.lt.s32.totalorder %s25, 1
      %s601 = scalar_select %p600, %s25, 1
      %s602 = scalar_lea.vmem %s7, %s601
      %p603 = scmp.lt.s32.totalorder %s25, 1
      %s604 = scalar_select %p603, %s25, 1
      %s605 = smul.addr %s604, 4
      %s606 = smul.addr %s605, 4
      %s607 = scalar_lea.vmem %s8, %s606
      %p608 = scmp.lt.s32.totalorder %s25, 1
      %s609 = scalar_select %p608, %s25, 1
      %s610 = scalar_lea.vmem %s9, %s609
      %p611 = scmp.lt.s32.totalorder %s25, 1
      %s612 = scalar_select %p611, %s25, 1
      %s613 = smul.addr %s612, 8
      %s614 = smul.addr %s613, 4
      %s615 = scalar_lea.vmem %s10, %s614
      %p616 = scmp.lt.s32.totalorder %s25, 1
      %s617 = scalar_select %p616, %s25, 1
      %s618 = scalar_lea.vmem %s11, %s617
      %p619 = scmp.lt.s32.totalorder %s25, 1
      %s620 = scalar_select %p619, %s25, 1
      %s621 = scalar_lea.vmem %s12, %s620
      %p622 = scmp.lt.s32.totalorder %s25, 1
      %s623 = scalar_select %p622, %s25, 1
      %s624 = scalar_lea.vmem %s13, %s623
      %p626 = scmp.eq.s32.totalorder %s25, 0
      // Predicated region
      $region77: #{bert_classifier_forward.4} parent=75 // pred_check
        %p627 = pneg %p626
      $region78: #{bert_classifier_forward.4} parent=75 // pred_check_branch
        %629 = sbr.rel (%p627) target = $region80
      $region79: #{bert_classifier_forward.4} parent=75 // pred_region
        %v630 = vld [vmem:[%s0] sm:$0xff]
        %v631 = vld [vmem:[%s0 + $0x8] sm:$0xff]
        %vm632 = vcmask 261120
        %633 = vst.msk [vmem:[%s14] sm:$0xff] %vm632, %v630
        %634 = vst.msk [vmem:[%s14 + $0x8] sm:$0xff] %vm632, %v631
      $region80: #{bert_classifier_forward.4} parent=75 // pred_fallthru
        _
      %v635 = vld [vmem:[%s14] sm:$0xff]
      %v636 = vld [vmem:[%s14 + $0x8] sm:$0xff]
      %v637 = vld [vmem:[%s1] sm:$0x3]
      %v638 = vpack.c.bf16 %v636, %v635
      %v639 = vld [vmem:[%s585] sm:$0xf]
      %v640 = vld [vmem:[%s585 + $0x4] sm:$0xf]
      %v641 = vld [vmem:[%s585 + $0x8] sm:$0xf]
      %v642 = vld [vmem:[%s585 + $0xc] sm:$0xf]
      %v643 = vld [vmem:[%s588] sm:$0x1]
      %v645 = vlaneseq
      %v646 = vshrl.u32 %v645, 7
      %v647 = vsub.s32 0, %v646
      %v648 = vrot.slane %v643, %v647
      %v654 = vunpack.c.l.b16 %v639
      %v655 = vunpack.c.l.b16 %v640
      %v656 = vunpack.c.l.b16 %v641
      %v657 = vunpack.c.l.b16 %v642
      %v658 = vpack.c.b16 %v655, %v654
      %v659 = vpack.c.b16 %v657, %v656
      %vm662 = vcmask 261120
      %v664 = vsel %vm662, %v638, 0
      %666 = vmatprep.subr.bf16.mxu0 0
      %667 = vmatpush1.bf16.msra.mxu0 %v658
      %668 = vmatprep.subr.bf16.mxu0 0
      %669 = vmatpush1.bf16.msra.mxu0 %v659
      %670 = vmatprep.subr.bf16.mxu0 0
      %671 = vmatpush1.bf16.msra.mxu0 0
      %672 = vmatprep.subr.bf16.mxu0 0
      %673 = vmatpush1.bf16.msra.mxu0 0
      %674 = vmatprep.subr.bf16.mxu0 0
      %675 = vmatpush1.bf16.msra.mxu0 0
      %676 = vmatprep.subr.bf16.mxu0 0
      %677 = vmatpush1.bf16.msra.mxu0 0
      %678 = vmatprep.subr.bf16.mxu0 0
      %679 = vmatpush1.bf16.msra.mxu0 0
      %680 = vmatprep.subr.bf16.mxu0 0
      %681 = vmatpush1.bf16.msra.mxu0 0
      %682 = vmatprep.subr.bf16.mxu0 0
      %683 = vmatpush1.bf16.msra.mxu0 0
      %684 = vmatprep.subr.bf16.mxu0 0
      %685 = vmatpush1.bf16.msra.mxu0 0
      %686 = vmatprep.subr.bf16.mxu0 0
      %687 = vmatpush1.bf16.msra.mxu0 0
      %688 = vmatprep.subr.bf16.mxu0 0
      %689 = vmatpush1.bf16.msra.mxu0 0
      %690 = vmatprep.subr.bf16.mxu0 0
      %691 = vmatpush1.bf16.msra.mxu0 0
      %692 = vmatprep.subr.bf16.mxu0 0
      %693 = vmatpush1.bf16.msra.mxu0 0
      %694 = vmatprep.subr.bf16.mxu0 0
      %695 = vmatpush1.bf16.msra.mxu0 0
      %696 = vmatprep.subr.bf16.mxu0 0
      %697 = vmatpush1.bf16.msra.mxu0 0
      %698 = vmatprep.mubr.bf16.mxu0 0
      %699 = vmatmul.mubr.bf16.gmra.mrb[0].mxu0 %v664
      %v700 = vpop.f32.mrb[0].mxu0
      %v701 = vadd.f32 %v648, %v700
      %v702 = vpop.f32.mrb[0].mxu0
      %v703 = vpop.f32.mrb[0].mxu0
      %v704 = vadd.f32 %v648, %v703
      %v705 = vpop.f32.mrb[0].mxu0
      %706 = vdwg.mxu0
      %708 = vrot.lane.b32.xlu0 %v701, 96
      %v709 = vpop.permute.xlu0 %708
      %vm710 = vcmask 130048
      %v711 = vsel %vm710, %v701, 0
      %v713 = vsel %vm710, %v709, 0
      %715 = vmatprep.subr.mxu0 0.0
      %716 = vmatpush1.xpose.msra.mxu0 %v713
      %717 = vmatprep.subr.mxu0 0.0
      %718 = vmatpush1.xpose.msra.mxu0 0.0
      %719 = vmatprep.subr.mxu0 0.0
      %720 = vmatpush1.xpose.msra.mxu0 0.0
      %721 = vmatprep.subr.mxu0 0.0
      %722 = vmatpush1.xpose.msra.mxu0 0.0
      %723 = vmatprep.subr.mxu0 0.0
      %724 = vmatpush1.xpose.msra.mxu0 0.0
      %725 = vmatprep.subr.mxu0 0.0
      %726 = vmatpush1.xpose.msra.mxu0 0.0
      %727 = vmatprep.subr.mxu0 0.0
      %728 = vmatpush1.xpose.msra.mxu0 0.0
      %729 = vmatprep.subr.mxu0 0.0
      %730 = vmatpush1.xpose.msra.mxu0 0.0
      %731 = vmatprep.subr.mxu0 0.0
      %732 = vmatpush1.xpose.msra.mxu0 0.0
      %733 = vmatprep.subr.mxu0 0.0
      %734 = vmatpush1.xpose.msra.mxu0 0.0
      %735 = vmatprep.subr.mxu0 0.0
      %736 = vmatpush1.xpose.msra.mxu0 0.0
      %737 = vmatprep.subr.mxu0 0.0
      %738 = vmatpush1.xpose.msra.mxu0 0.0
      %739 = vmatprep.subr.mxu0 0.0
      %740 = vmatpush1.xpose.msra.mxu0 0.0
      %741 = vmatprep.subr.mxu0 0.0
      %742 = vmatpush1.xpose.msra.mxu0 0.0
      %743 = vmatprep.subr.mxu0 0.0
      %744 = vmatpush1.xpose.msra.mxu0 0.0
      %745 = vmatprep.subr.mxu0 0.0
      %746 = vmatpush1.xpose.msra.mxu0 0.0
      %747 = vmatprep.subr.mxu0 0.0
      %748 = vmatpush1.xpose.msra.mxu0 0.0
      %749 = vmatprep.subr.mxu0 0.0
      %750 = vmatpush1.xpose.msra.mxu0 0.0
      %751 = vmatprep.subr.mxu0 0.0
      %752 = vmatpush1.xpose.msra.mxu0 0.0
      %753 = vmatprep.subr.mxu0 0.0
      %754 = vmatpush1.xpose.msra.mxu0 0.0
      %755 = vmatprep.subr.mxu0 0.0
      %756 = vmatpush1.xpose.msra.mxu0 0.0
      %757 = vmatprep.subr.mxu0 0.0
      %758 = vmatpush1.xpose.msra.mxu0 0.0
      %759 = vmatprep.subr.mxu0 0.0
      %760 = vmatpush1.xpose.msra.mxu0 0.0
      %761 = vmatprep.subr.mxu0 0.0
      %762 = vmatpush1.xpose.msra.mxu0 0.0
      %763 = vmatprep.subr.mxu0 0.0
      %764 = vmatpush1.xpose.msra.mxu0 0.0
      %765 = vmatprep.subr.mxu0 0.0
      %766 = vmatpush1.xpose.msra.mxu0 0.0
      %767 = vmatprep.subr.mxu0 0.0
      %768 = vmatpush1.xpose.msra.mxu0 0.0
      %769 = vmatprep.subr.mxu0 0.0
      %770 = vmatpush1.xpose.msra.mxu0 0.0
      %771 = vmatprep.subr.mxu0 0.0
      %772 = vmatpush1.xpose.msra.mxu0 0.0
      %773 = vmatprep.subr.mxu0 0.0
      %774 = vmatpush1.xpose.msra.mxu0 0.0
      %775 = vmatprep.subr.mxu0 0.0
      %776 = vmatpush1.xpose.msra.mxu0 0.0
      %777 = vmatprep.subr.mxu0 0.0
      %778 = vmatpush1.xpose.msra.mxu0 0.0
      %779 = vmatprep.mubr.f32.mxu0 0.0
      %780 = vmatmul.mubr.f32.gmra.mrb[0].mxu0 %v711
      %v781 = vpop.f32.mrb[0].mxu0
      %v782 = vadd.f32 0.0, %v781
      %v783 = vpop.f32.mrb[0].mxu0
      %784 = vdwg.mxu0
      %v785 = vmul.f32 %v782, 0.25
      %v786 = vlaneseq
      %v787 = vshrl.u32 %v786, 7
      %v788 = vsub.s32 0, %v787
      %v789 = vrot.slane %v637, %v788
      %v790 = vadd.f32 %v785, %v789
      %vm791 = vcmask 64512
      %v792 = vsel %vm791, %v790, -inf
      %793 = vmax.xlane.f32.xlu0 %v792
      %v794 = vpop.xlane.xlu0 %793
      %v795 = vsub.f32 %v790, %v794
      %v796 = vmul.f32 %v795, 1.442695
      %v797 = vpow.pop %v796
      %v798 = vsel %vm791, %v797, 0.0
      %799 = vadd.xlane.f32.xlu0 %v798
      %v800 = vpop.xlane.xlu0 %799
      %v801 = vrcp.pop %v800
      %v802 = vmul.f32 %v797, %v801
      %803 = vrot.lane.b32.xlu0 %v701, 64
      %v804 = vpop.permute.xlu0 %803
      %v807 = vsel %vm791, %v802, 0
      %809 = vmatprep.subr.mxu0 0.0
      %810 = vmatpush1.msra.mxu0 %v804
      %811 = vmatprep.subr.mxu0 0.0
      %812 = vmatpush1.msra.mxu0 0.0
      %813 = vmatprep.subr.mxu0 0.0
      %814 = vmatpush1.msra.mxu0 0.0
      %815 = vmatprep.subr.mxu0 0.0
      %816 = vmatpush1.msra.mxu0 0.0
      %817 = vmatprep.subr.mxu0 0.0
      %818 = vmatpush1.msra.mxu0 0.0
      %819 = vmatprep.subr.mxu0 0.0
      %820 = vmatpush1.msra.mxu0 0.0
      %821 = vmatprep.subr.mxu0 0.0
      %822 = vmatpush1.msra.mxu0 0.0
      %823 = vmatprep.subr.mxu0 0.0
      %824 = vmatpush1.msra.mxu0 0.0
      %825 = vmatprep.subr.mxu0 0.0
      %826 = vmatpush1.msra.mxu0 0.0
      %827 = vmatprep.subr.mxu0 0.0
      %828 = vmatpush1.msra.mxu0 0.0
      %829 = vmatprep.subr.mxu0 0.0
      %830 = vmatpush1.msra.mxu0 0.0
      %831 = vmatprep.subr.mxu0 0.0
      %832 = vmatpush1.msra.mxu0 0.0
      %833 = vmatprep.subr.mxu0 0.0
      %834 = vmatpush1.msra.mxu0 0.0
      %835 = vmatprep.subr.mxu0 0.0
      %836 = vmatpush1.msra.mxu0 0.0
      %837 = vmatprep.subr.mxu0 0.0
      %838 = vmatpush1.msra.mxu0 0.0
      %839 = vmatprep.subr.mxu0 0.0
      %840 = vmatpush1.msra.mxu0 0.0
      %841 = vmatprep.subr.mxu0 0.0
      %842 = vmatpush1.msra.mxu0 0.0
      %843 = vmatprep.subr.mxu0 0.0
      %844 = vmatpush1.msra.mxu0 0.0
      %845 = vmatprep.subr.mxu0 0.0
      %846 = vmatpush1.msra.mxu0 0.0
      %847 = vmatprep.subr.mxu0 0.0
      %848 = vmatpush1.msra.mxu0 0.0
      %849 = vmatprep.subr.mxu0 0.0
      %850 = vmatpush1.msra.mxu0 0.0
      %851 = vmatprep.subr.mxu0 0.0
      %852 = vmatpush1.msra.mxu0 0.0
      %853 = vmatprep.subr.mxu0 0.0
      %854 = vmatpush1.msra.mxu0 0.0
      %855 = vmatprep.subr.mxu0 0.0
      %856 = vmatpush1.msra.mxu0 0.0
      %857 = vmatprep.subr.mxu0 0.0
      %858 = vmatpush1.msra.mxu0 0.0
      %859 = vmatprep.subr.mxu0 0.0
      %860 = vmatpush1.msra.mxu0 0.0
      %861 = vmatprep.subr.mxu0 0.0
      %862 = vmatpush1.msra.mxu0 0.0
      %863 = vmatprep.subr.mxu0 0.0
      %864 = vmatpush1.msra.mxu0 0.0
      %865 = vmatprep.subr.mxu0 0.0
      %866 = vmatpush1.msra.mxu0 0.0
      %867 = vmatprep.subr.mxu0 0.0
      %868 = vmatpush1.msra.mxu0 0.0
      %869 = vmatprep.subr.mxu0 0.0
      %870 = vmatpush1.msra.mxu0 0.0
      %871 = vmatprep.subr.mxu0 0.0
      %872 = vmatpush1.msra.mxu0 0.0
      %873 = vmatprep.mubr.f32.mxu0 0.0
      %874 = vmatmul.mubr.f32.gmra.mrb[0].mxu0 %v807
      %v875 = vpop.f32.mrb[0].mxu0
      %v876 = vadd.f32 0.0, %v875
      %v877 = vpop.f32.mrb[0].mxu0
      %878 = vdwg.mxu0
      %879 = vrot.lane.b32.xlu0 %v701, 112
      %v880 = vpop.permute.xlu0 %879
      %881 = vrot.lane.b32.xlu0 %v701, 80
      %v882 = vpop.permute.xlu0 %881
      %v883 = vsel %vm710, %v880, 0
      %v885 = vsel %vm710, %v882, 0
      %887 = vmatprep.subr.mxu0 0.0
      %888 = vmatpush1.xpose.msra.mxu0 %v885
      %889 = vmatprep.subr.mxu0 0.0
      %890 = vmatpush1.xpose.msra.mxu0 0.0
      %891 = vmatprep.subr.mxu0 0.0
      %892 = vmatpush1.xpose.msra.mxu0 0.0
      %893 = vmatprep.subr.mxu0 0.0
      %894 = vmatpush1.xpose.msra.mxu0 0.0
      %895 = vmatprep.subr.mxu0 0.0
      %896 = vmatpush1.xpose.msra.mxu0 0.0
      %897 = vmatprep.subr.mxu0 0.0
      %898 = vmatpush1.xpose.msra.mxu0 0.0
      %899 = vmatprep.subr.mxu0 0.0
      %900 = vmatpush1.xpose.msra.mxu0 0.0
      %901 = vmatprep.subr.mxu0 0.0
      %902 = vmatpush1.xpose.msra.mxu0 0.0
      %903 = vmatprep.subr.mxu0 0.0
      %904 = vmatpush1.xpose.msra.mxu0 0.0
      %905 = vmatprep.subr.mxu0 0.0
      %906 = vmatpush1.xpose.msra.mxu0 0.0
      %907 = vmatprep.subr.mxu0 0.0
      %908 = vmatpush1.xpose.msra.mxu0 0.0
      %909 = vmatprep.subr.mxu0 0.0
      %910 = vmatpush1.xpose.msra.mxu0 0.0
      %911 = vmatprep.subr.mxu0 0.0
      %912 = vmatpush1.xpose.msra.mxu0 0.0
      %913 = vmatprep.subr.mxu0 0.0
      %914 = vmatpush1.xpose.msra.mxu0 0.0
      %915 = vmatprep.subr.mxu0 0.0
      %916 = vmatpush1.xpose.msra.mxu0 0.0
      %917 = vmatprep.subr.mxu0 0.0
      %918 = vmatpush1.xpose.msra.mxu0 0.0
      %919 = vmatprep.subr.mxu0 0.0
      %920 = vmatpush1.xpose.msra.mxu0 0.0
      %921 = vmatprep.subr.mxu0 0.0
      %922 = vmatpush1.xpose.msra.mxu0 0.0
      %923 = vmatprep.subr.mxu0 0.0
      %924 = vmatpush1.xpose.msra.mxu0 0.0
      %925 = vmatprep.subr.mxu0 0.0
      %926 = vmatpush1.xpose.msra.mxu0 0.0
      %927 = vmatprep.subr.mxu0 0.0
      %928 = vmatpush1.xpose.msra.mxu0 0.0
      %929 = vmatprep.subr.mxu0 0.0
      %930 = vmatpush1.xpose.msra.mxu0 0.0
      %931 = vmatprep.subr.mxu0 0.0
      %932 = vmatpush1.xpose.msra.mxu0 0.0
      %933 = vmatprep.subr.mxu0 0.0
      %934 = vmatpush1.xpose.msra.mxu0 0.0
      %935 = vmatprep.subr.mxu0 0.0
      %936 = vmatpush1.xpose.msra.mxu0 0.0
      %937 = vmatprep.subr.mxu0 0.0
      %938 = vmatpush1.xpose.msra.mxu0 0.0
      %939 = vmatprep.subr.mxu0 0.0
      %940 = vmatpush1.xpose.msra.mxu0 0.0
      %941 = vmatprep.subr.mxu0 0.0
      %942 = vmatpush1.xpose.msra.mxu0 0.0
      %943 = vmatprep.subr.mxu0 0.0
      %944 = vmatpush1.xpose.msra.mxu0 0.0
      %945 = vmatprep.subr.mxu0 0.0
      %946 = vmatpush1.xpose.msra.mxu0 0.0
      %947 = vmatprep.subr.mxu0 0.0
      %948 = vmatpush1.xpose.msra.mxu0 0.0
      %949 = vmatprep.subr.mxu0 0.0
      %950 = vmatpush1.xpose.msra.mxu0 0.0
      %951 = vmatprep.mubr.f32.mxu0 0.0
      %952 = vmatmul.mubr.f32.gmra.mrb[0].mxu0 %v883
      %v953 = vpop.f32.mrb[0].mxu0
      %v954 = vadd.f32 0.0, %v953
      %v955 = vpop.f32.mrb[0].mxu0
      %956 = vdwg.mxu0
      %v957 = vmul.f32 %v954, 0.25
      %v958 = vadd.f32 %v957, %v789
      %v959 = vsel %vm791, %v958, -inf
      %960 = vmax.xlane.f32.xlu0 %v959
      %v961 = vpop.xlane.xlu0 %960
      %v962 = vsub.f32 %v958, %v961
      %v963 = vmul.f32 %v962, 1.442695
      %v964 = vpow.pop %v963
      %v965 = vsel %vm791, %v964, 0.0
      %966 = vadd.xlane.f32.xlu0 %v965
      %v967 = vpop.xlane.xlu0 %966
      %v968 = vrcp.pop %v967
      %v969 = vmul.f32 %v964, %v968
      %970 = vrot.lane.b32.xlu0 %v701, 48
      %v971 = vpop.permute.xlu0 %970
      %v974 = vsel %vm791, %v969, 0
      %976 = vmatprep.subr.mxu0 0.0
      %977 = vmatpush1.msra.mxu0 %v971
      %978 = vmatprep.subr.mxu0 0.0
      %979 = vmatpush1.msra.mxu0 0.0
      %980 = vmatprep.subr.mxu0 0.0
      %981 = vmatpush1.msra.mxu0 0.0
      %982 = vmatprep.subr.mxu0 0.0
      %983 = vmatpush1.msra.mxu0 0.0
      %984 = vmatprep.subr.mxu0 0.0
      %985 = vmatpush1.msra.mxu0 0.0
      %986 = vmatprep.subr.mxu0 0.0
      %987 = vmatpush1.msra.mxu0 0.0
      %988 = vmatprep.subr.mxu0 0.0
      %989 = vmatpush1.msra.mxu0 0.0
      %990 = vmatprep.subr.mxu0 0.0
      %991 = vmatpush1.msra.mxu0 0.0
      %992 = vmatprep.subr.mxu0 0.0
      %993 = vmatpush1.msra.mxu0 0.0
      %994 = vmatprep.subr.mxu0 0.0
      %995 = vmatpush1.msra.mxu0 0.0
      %996 = vmatprep.subr.mxu0 0.0
      %997 = vmatpush1.msra.mxu0 0.0
      %998 = vmatprep.subr.mxu0 0.0
      %999 = vmatpush1.msra.mxu0 0.0
      %1000 = vmatprep.subr.mxu0 0.0
      %1001 = vmatpush1.msra.mxu0 0.0
      %1002 = vmatprep.subr.mxu0 0.0
      %1003 = vmatpush1.msra.mxu0 0.0
      %1004 = vmatprep.subr.mxu0 0.0
      %1005 = vmatpush1.msra.mxu0 0.0
      %1006 = vmatprep.subr.mxu0 0.0
      %1007 = vmatpush1.msra.mxu0 0.0
      %1008 = vmatprep.subr.mxu0 0.0
      %1009 = vmatpush1.msra.mxu0 0.0
      %1010 = vmatprep.subr.mxu0 0.0
      %1011 = vmatpush1.msra.mxu0 0.0
      %1012 = vmatprep.subr.mxu0 0.0
      %1013 = vmatpush1.msra.mxu0 0.0
      %1014 = vmatprep.subr.mxu0 0.0
      %1015 = vmatpush1.msra.mxu0 0.0
      %1016 = vmatprep.subr.mxu0 0.0
      %1017 = vmatpush1.msra.mxu0 0.0
      %1018 = vmatprep.subr.mxu0 0.0
      %1019 = vmatpush1.msra.mxu0 0.0
      %1020 = vmatprep.subr.mxu0 0.0
      %1021 = vmatpush1.msra.mxu0 0.0
      %1022 = vmatprep.subr.mxu0 0.0
      %1023 = vmatpush1.msra.mxu0 0.0
      %1024 = vmatprep.subr.mxu0 0.0
      %1025 = vmatpush1.msra.mxu0 0.0
      %1026 = vmatprep.subr.mxu0 0.0
      %1027 = vmatpush1.msra.mxu0 0.0
      %1028 = vmatprep.subr.mxu0 0.0
      %1029 = vmatpush1.msra.mxu0 0.0
      %1030 = vmatprep.subr.mxu0 0.0
      %1031 = vmatpush1.msra.mxu0 0.0
      %1032 = vmatprep.subr.mxu0 0.0
      %1033 = vmatpush1.msra.mxu0 0.0
      %1034 = vmatprep.subr.mxu0 0.0
      %1035 = vmatpush1.msra.mxu0 0.0
      %1036 = vmatprep.subr.mxu0 0.0
      %1037 = vmatpush1.msra.mxu0 0.0
      %1038 = vmatprep.subr.mxu0 0.0
      %1039 = vmatpush1.msra.mxu0 0.0
      %1040 = vmatprep.mubr.f32.mxu0 0.0
      %1041 = vmatmul.mubr.f32.gmra.mrb[0].mxu0 %v974
      %v1042 = vpop.f32.mrb[0].mxu0
      %v1043 = vadd.f32 0.0, %v1042
      %v1044 = vpop.f32.mrb[0].mxu0
      %1045 = vdwg.mxu0
      %1047 = vrot.lane.b32.xlu0 %v1043, 16
      %v1048 = vpop.permute.xlu0 %1047
      %v1050 = vsel %vm710, %v876, %v1048
      %1052 = vrot.lane.b32.xlu0 %v704, 96
      %v1053 = vpop.permute.xlu0 %1052
      %v1054 = vsel %vm710, %v704, 0
      %v1056 = vsel %vm710, %v1053, 0
      %1058 = vmatprep.subr.mxu0 0.0
      %1059 = vmatpush1.xpose.msra.mxu0 %v1056
      %1060 = vmatprep.subr.mxu0 0.0
      %1061 = vmatpush1.xpose.msra.mxu0 0.0
      %1062 = vmatprep.subr.mxu0 0.0
      %1063 = vmatpush1.xpose.msra.mxu0 0.0
      %1064 = vmatprep.subr.mxu0 0.0
      %1065 = vmatpush1.xpose.msra.mxu0 0.0
      %1066 = vmatprep.subr.mxu0 0.0
      %1067 = vmatpush1.xpose.msra.mxu0 0.0
      %1068 = vmatprep.subr.mxu0 0.0
      %1069 = vmatpush1.xpose.msra.mxu0 0.0
      %1070 = vmatprep.subr.mxu0 0.0
      %1071 = vmatpush1.xpose.msra.mxu0 0.0
      %1072 = vmatprep.subr.mxu0 0.0
      %1073 = vmatpush1.xpose.msra.mxu0 0.0
      %1074 = vmatprep.subr.mxu0 0.0
      %1075 = vmatpush1.xpose.msra.mxu0 0.0
      %1076 = vmatprep.subr.mxu0 0.0
      %1077 = vmatpush1.xpose.msra.mxu0 0.0
      %1078 = vmatprep.subr.mxu0 0.0
      %1079 = vmatpush1.xpose.msra.mxu0 0.0
      %1080 = vmatprep.subr.mxu0 0.0
      %1081 = vmatpush1.xpose.msra.mxu0 0.0
      %1082 = vmatprep.subr.mxu0 0.0
      %1083 = vmatpush1.xpose.msra.mxu0 0.0
      %1084 = vmatprep.subr.mxu0 0.0
      %1085 = vmatpush1.xpose.msra.mxu0 0.0
      %1086 = vmatprep.subr.mxu0 0.0
      %1087 = vmatpush1.xpose.msra.mxu0 0.0
      %1088 = vmatprep.subr.mxu0 0.0
      %1089 = vmatpush1.xpose.msra.mxu0 0.0
      %1090 = vmatprep.subr.mxu0 0.0
      %1091 = vmatpush1.xpose.msra.mxu0 0.0
      %1092 = vmatprep.subr.mxu0 0.0
      %1093 = vmatpush1.xpose.msra.mxu0 0.0
      %1094 = vmatprep.subr.mxu0 0.0
      %1095 = vmatpush1.xpose.msra.mxu0 0.0
      %1096 = vmatprep.subr.mxu0 0.0
      %1097 = vmatpush1.xpose.msra.mxu0 0.0
      %1098 = vmatprep.subr.mxu0 0.0
      %1099 = vmatpush1.xpose.msra.mxu0 0.0
      %1100 = vmatprep.subr.mxu0 0.0
      %1101 = vmatpush1.xpose.msra.mxu0 0.0
      %1102 = vmatprep.subr.mxu0 0.0
      %1103 = vmatpush1.xpose.msra.mxu0 0.0
      %1104 = vmatprep.subr.mxu0 0.0
      %1105 = vmatpush1.xpose.msra.mxu0 0.0
      %1106 = vmatprep.subr.mxu0 0.0
      %1107 = vmatpush1.xpose.msra.mxu0 0.0
      %1108 = vmatprep.subr.mxu0 0.0
      %1109 = vmatpush1.xpose.msra.mxu0 0.0
      %1110 = vmatprep.subr.mxu0 0.0
      %1111 = vmatpush1.xpose.msra.mxu0 0.0
      %1112 = vmatprep.subr.mxu0 0.0
      %1113 = vmatpush1.xpose.msra.mxu0 0.0
      %1114 = vmatprep.subr.mxu0 0.0
      %1115 = vmatpush1.xpose.msra.mxu0 0.0
      %1116 = vmatprep.subr.mxu0 0.0
      %1117 = vmatpush1.xpose.msra.mxu0 0.0
      %1118 = vmatprep.subr.mxu0 0.0
      %1119 = vmatpush1.xpose.msra.mxu0 0.0
      %1120 = vmatprep.subr.mxu0 0.0
      %1121 = vmatpush1.xpose.msra.mxu0 0.0
      %1122 = vmatprep.mubr.f32.mxu0 0.0
      %1123 = vmatmul.mubr.f32.gmra.mrb[0].mxu0 %v1054
      %v1124 = vpop.f32.mrb[0].mxu0
      %v1125 = vadd.f32 0.0, %v1124
      %v1126 = vpop.f32.mrb[0].mxu0
      %1127 = vdwg.mxu0
      %v1128 = vmul.f32 %v1125, 0.25
      %v1129 = vlaneseq
      %v1130 = vshrl.u32 %v1129, 7
      %v1131 = vsub.s32 1, %v1130
      %v1132 = vrot.slane %v637, %v1131
      %v1133 = vadd.f32 %v1128, %v1132
      %v1134 = vsel %vm791, %v1133, -inf
      %1135 = vmax.xlane.f32.xlu0 %v1134
      %v1136 = vpop.xlane.xlu0 %1135
      %v1137 = vsub.f32 %v1133, %v1136
      %v1138 = vmul.f32 %v1137, 1.442695
      %v1139 = vpow.pop %v1138
      %v1140 = vsel %vm791, %v1139, 0.0
      %1141 = vadd.xlane.f32.xlu0 %v1140
      %v1142 = vpop.xlane.xlu0 %1141
      %v1143 = vrcp.pop %v1142
      %v1144 = vmul.f32 %v1139, %v1143
      %1145 = vrot.lane.b32.xlu0 %v704, 64
      %v1146 = vpop.permute.xlu0 %1145
      %v1149 = vsel %vm791, %v1144, 0
      %1151 = vmatprep.subr.mxu0 0.0
      %1152 = vmatpush1.msra.mxu0 %v1146
      %1153 = vmatprep.subr.mxu0 0.0
      %1154 = vmatpush1.msra.mxu0 0.0
      %1155 = vmatprep.subr.mxu0 0.0
      %1156 = vmatpush1.msra.mxu0 0.0
      %1157 = vmatprep.subr.mxu0 0.0
      %1158 = vmatpush1.msra.mxu0 0.0
      %1159 = vmatprep.subr.mxu0 0.0
      %1160 = vmatpush1.msra.mxu0 0.0
      %1161 = vmatprep.subr.mxu0 0.0
      %1162 = vmatpush1.msra.mxu0 0.0
      %1163 = vmatprep.subr.mxu0 0.0
      %1164 = vmatpush1.msra.mxu0 0.0
      %1165 = vmatprep.subr.mxu0 0.0
      %1166 = vmatpush1.msra.mxu0 0.0
      %1167 = vmatprep.subr.mxu0 0.0
      %1168 = vmatpush1.msra.mxu0 0.0
      %1169 = vmatprep.subr.mxu0 0.0
      %1170 = vmatpush1.msra.mxu0 0.0
      %1171 = vmatprep.subr.mxu0 0.0
      %1172 = vmatpush1.msra.mxu0 0.0
      %1173 = vmatprep.subr.mxu0 0.0
      %1174 = vmatpush1.msra.mxu0 0.0
      %1175 = vmatprep.subr.mxu0 0.0
      %1176 = vmatpush1.msra.mxu0 0.0
      %1177 = vmatprep.subr.mxu0 0.0
      %1178 = vmatpush1.msra.mxu0 0.0
      %1179 = vmatprep.subr.mxu0 0.0
      %1180 = vmatpush1.msra.mxu0 0.0
      %1181 = vmatprep.subr.mxu0 0.0
      %1182 = vmatpush1.msra.mxu0 0.0
      %1183 = vmatprep.subr.mxu0 0.0
      %1184 = vmatpush1.msra.mxu0 0.0
      %1185 = vmatprep.subr.mxu0 0.0
      %1186 = vmatpush1.msra.mxu0 0.0
      %1187 = vmatprep.subr.mxu0 0.0
      %1188 = vmatpush1.msra.mxu0 0.0
      %1189 = vmatprep.subr.mxu0 0.0
      %1190 = vmatpush1.msra.mxu0 0.0
      %1191 = vmatprep.subr.mxu0 0.0
      %1192 = vmatpush1.msra.mxu0 0.0
      %1193 = vmatprep.subr.mxu0 0.0
      %1194 = vmatpush1.msra.mxu0 0.0
      %1195 = vmatprep.subr.mxu0 0.0
      %1196 = vmatpush1.msra.mxu0 0.0
      %1197 = vmatprep.subr.mxu0 0.0
      %1198 = vmatpush1.msra.mxu0 0.0
      %1199 = vmatprep.subr.mxu0 0.0
      %1200 = vmatpush1.msra.mxu0 0.0
      %1201 = vmatprep.subr.mxu0 0.0
      %1202 = vmatpush1.msra.mxu0 0.0
      %1203 = vmatprep.subr.mxu0 0.0
      %1204 = vmatpush1.msra.mxu0 0.0
      %1205 = vmatprep.subr.mxu0 0.0
      %1206 = vmatpush1.msra.mxu0 0.0
      %1207 = vmatprep.subr.mxu0 0.0
      %1208 = vmatpush1.msra.mxu0 0.0
      %1209 = vmatprep.subr.mxu0 0.0
      %1210 = vmatpush1.msra.mxu0 0.0
      %1211 = vmatprep.subr.mxu0 0.0
      %1212 = vmatpush1.msra.mxu0 0.0
      %1213 = vmatprep.subr.mxu0 0.0
      %1214 = vmatpush1.msra.mxu0 0.0
      %1215 = vmatprep.mubr.f32.mxu0 0.0
      %1216 = vmatmul.mubr.f32.gmra.mrb[0].mxu0 %v1149
      %v1217 = vpop.f32.mrb[0].mxu0
      %v1218 = vadd.f32 0.0, %v1217
      %v1219 = vpop.f32.mrb[0].mxu0
      %1220 = vdwg.mxu0
      %1221 = vrot.lane.b32.xlu0 %v704, 112
      %v1222 = vpop.permute.xlu0 %1221
      %1223 = vrot.lane.b32.xlu0 %v704, 80
      %v1224 = vpop.permute.xlu0 %1223
      %v1225 = vsel %vm710, %v1222, 0
      %v1227 = vsel %vm710, %v1224, 0
      %1229 = vmatprep.subr.mxu0 0.0
      %1230 = vmatpush1.xpose.msra.mxu0 %v1227
      %1231 = vmatprep.subr.mxu0 0.0
      %1232 = vmatpush1.xpose.msra.mxu0 0.0
      %1233 = vmatprep.subr.mxu0 0.0
      %1234 = vmatpush1.xpose.msra.mxu0 0.0
      %1235 = vmatprep.subr.mxu0 0.0
      %1236 = vmatpush1.xpose.msra.mxu0 0.0
      %1237 = vmatprep.subr.mxu0 0.0
      %1238 = vmatpush1.xpose.msra.mxu0 0.0
      %1239 = vmatprep.subr.mxu0 0.0
      %1240 = vmatpush1.xpose.msra.mxu0 0.0
      %1241 = vmatprep.subr.mxu0 0.0
      %1242 = vmatpush1.xpose.msra.mxu0 0.0
      %1243 = vmatprep.subr.mxu0 0.0
      %1244 = vmatpush1.xpose.msra.mxu0 0.0
      %1245 = vmatprep.subr.mxu0 0.0
      %1246 = vmatpush1.xpose.msra.mxu0 0.0
      %1247 = vmatprep.subr.mxu0 0.0
      %1248 = vmatpush1.xpose.msra.mxu0 0.0
      %1249 = vmatprep.subr.mxu0 0.0
      %1250 = vmatpush1.xpose.msra.mxu0 0.0
      %1251 = vmatprep.subr.mxu0 0.0
      %1252 = vmatpush1.xpose.msra.mxu0 0.0
      %1253 = vmatprep.subr.mxu0 0.0
      %1254 = vmatpush1.xpose.msra.mxu0 0.0
      %1255 = vmatprep.subr.mxu0 0.0
      %1256 = vmatpush1.xpose.msra.mxu0 0.0
      %1257 = vmatprep.subr.mxu0 0.0
      %1258 = vmatpush1.xpose.msra.mxu0 0.0
      %1259 = vmatprep.subr.mxu0 0.0
      %1260 = vmatpush1.xpose.msra.mxu0 0.0
      %1261 = vmatprep.subr.mxu0 0.0
      %1262 = vmatpush1.xpose.msra.mxu0 0.0
      %1263 = vmatprep.subr.mxu0 0.0
      %1264 = vmatpush1.xpose.msra.mxu0 0.0
      %1265 = vmatprep.subr.mxu0 0.0
      %1266 = vmatpush1.xpose.msra.mxu0 0.0
      %1267 = vmatprep.subr.mxu0 0.0
      %1268 = vmatpush1.xpose.msra.mxu0 0.0
      %1269 = vmatprep.subr.mxu0 0.0
      %1270 = vmatpush1.xpose.msra.mxu0 0.0
      %1271 = vmatprep.subr.mxu0 0.0
      %1272 = vmatpush1.xpose.msra.mxu0 0.0
      %1273 = vmatprep.subr.mxu0 0.0
      %1274 = vmatpush1.xpose.msra.mxu0 0.0
      %1275 = vmatprep.subr.mxu0 0.0
      %1276 = vmatpush1.xpose.msra.mxu0 0.0
      %1277 = vmatprep.subr.mxu0 0.0
      %1278 = vmatpush1.xpose.msra.mxu0 0.0
      %1279 = vmatprep.subr.mxu0 0.0
      %1280 = vmatpush1.xpose.msra.mxu0 0.0
      %1281 = vmatprep.subr.mxu0 0.0
      %1282 = vmatpush1.xpose.msra.mxu0 0.0
      %1283 = vmatprep.subr.mxu0 0.0
      %1284 = vmatpush1.xpose.msra.mxu0 0.0
      %1285 = vmatprep.subr.mxu0 0.0
      %1286 = vmatpush1.xpose.msra.mxu0 0.0
      %1287 = vmatprep.subr.mxu0 0.0
      %1288 = vmatpush1.xpose.msra.mxu0 0.0
      %1289 = vmatprep.subr.mxu0 0.0
      %1290 = vmatpush1.xpose.msra.mxu0 0.0
      %1291 = vmatprep.subr.mxu0 0.0
      %1292 = vmatpush1.xpose.msra.mxu0 0.0
      %1293 = vmatprep.mubr.f32.mxu0 0.0
      %1294 = vmatmul.mubr.f32.gmra.mrb[0].mxu0 %v1225
      %v1295 = vpop.f32.mrb[0].mxu0
      %v1296 = vadd.f32 0.0, %v1295
      %v1297 = vpop.f32.mrb[0].mxu0
      %1298 = vdwg.mxu0
      %v1299 = vmul.f32 %v1296, 0.25
      %v1300 = vadd.f32 %v1299, %v1132
      %v1301 = vsel %vm791, %v1300, -inf
      %1302 = vmax.xlane.f32.xlu0 %v1301
      %v1303 = vpop.xlane.xlu0 %1302
      %v1304 = vsub.f32 %v1300, %v1303
      %v1305 = vmul.f32 %v1304, 1.442695
      %v1306 = vpow.pop %v1305
      %v1307 = vsel %vm791, %v1306, 0.0
      %1308 = vadd.xlane.f32.xlu0 %v1307
      %v1309 = vpop.xlane.xlu0 %1308
      %v1310 = vrcp.pop %v1309
      %v1311 = vmul.f32 %v1306, %v1310
      %1312 = vrot.lane.b32.xlu0 %v704, 48
      %v1313 = vpop.permute.xlu0 %1312
      %v1316 = vsel %vm791, %v1311, 0
      %1318 = vmatprep.subr.mxu0 0.0
      %1319 = vmatpush1.msra.mxu0 %v1313
      %1320 = vmatprep.subr.mxu0 0.0
      %1321 = vmatpush1.msra.mxu0 0.0
      %1322 = vmatprep.subr.mxu0 0.0
      %1323 = vmatpush1.msra.mxu0 0.0
      %1324 = vmatprep.subr.mxu0 0.0
      %1325 = vmatpush1.msra.mxu0 0.0
      %1326 = vmatprep.subr.mxu0 0.0
      %1327 = vmatpush1.msra.mxu0 0.0
      %1328 = vmatprep.subr.mxu0 0.0
      %1329 = vmatpush1.msra.mxu0 0.0
      %1330 = vmatprep.subr.mxu0 0.0
      %1331 = vmatpush1.msra.mxu0 0.0
      %1332 = vmatprep.subr.mxu0 0.0
      %1333 = vmatpush1.msra.mxu0 0.0
      %1334 = vmatprep.subr.mxu0 0.0
      %1335 = vmatpush1.msra.mxu0 0.0
      %1336 = vmatprep.subr.mxu0 0.0
      %1337 = vmatpush1.msra.mxu0 0.0
      %1338 = vmatprep.subr.mxu0 0.0
      %1339 = vmatpush1.msra.mxu0 0.0
      %1340 = vmatprep.subr.mxu0 0.0
      %1341 = vmatpush1.msra.mxu0 0.0
      %1342 = vmatprep.subr.mxu0 0.0
      %1343 = vmatpush1.msra.mxu0 0.0
      %1344 = vmatprep.subr.mxu0 0.0
      %1345 = vmatpush1.msra.mxu0 0.0
      %1346 = vmatprep.subr.mxu0 0.0
      %1347 = vmatpush1.msra.mxu0 0.0
      %1348 = vmatprep.subr.mxu0 0.0
      %1349 = vmatpush1.msra.mxu0 0.0
      %1350 = vmatprep.subr.mxu0 0.0
      %1351 = vmatpush1.msra.mxu0 0.0
      %1352 = vmatprep.subr.mxu0 0.0
      %1353 = vmatpush1.msra.mxu0 0.0
      %1354 = vmatprep.subr.mxu0 0.0
      %1355 = vmatpush1.msra.mxu0 0.0
      %1356 = vmatprep.subr.mxu0 0.0
      %1357 = vmatpush1.msra.mxu0 0.0
      %1358 = vmatprep.subr.mxu0 0.0
      %1359 = vmatpush1.msra.mxu0 0.0
      %1360 = vmatprep.subr.mxu0 0.0
      %1361 = vmatpush1.msra.mxu0 0.0
      %1362 = vmatprep.subr.mxu0 0.0
      %1363 = vmatpush1.msra.mxu0 0.0
      %1364 = vmatprep.subr.mxu0 0.0
      %1365 = vmatpush1.msra.mxu0 0.0
      %1366 = vmatprep.subr.mxu0 0.0
      %1367 = vmatpush1.msra.mxu0 0.0
      %1368 = vmatprep.subr.mxu0 0.0
      %1369 = vmatpush1.msra.mxu0 0.0
      %1370 = vmatprep.subr.mxu0 0.0
      %1371 = vmatpush1.msra.mxu0 0.0
      %1372 = vmatprep.subr.mxu0 0.0
      %1373 = vmatpush1.msra.mxu0 0.0
      %1374 = vmatprep.subr.mxu0 0.0
      %1375 = vmatpush1.msra.mxu0 0.0
      %1376 = vmatprep.subr.mxu0 0.0
      %1377 = vmatpush1.msra.mxu0 0.0
      %1378 = vmatprep.subr.mxu0 0.0
      %1379 = vmatpush1.msra.mxu0 0.0
      %1380 = vmatprep.subr.mxu0 0.0
      %1381 = vmatpush1.msra.mxu0 0.0
      %1382 = vmatprep.mubr.f32.mxu0 0.0
      %1383 = vmatmul.mubr.f32.gmra.mrb[0].mxu0 %v1316
      %v1384 = vpop.f32.mrb[0].mxu0
      %v1385 = vadd.f32 0.0, %v1384
      %v1386 = vpop.f32.mrb[0].mxu0
      %1387 = vdwg.mxu0
      %1389 = vrot.lane.b32.xlu0 %v1385, 16
      %v1390 = vpop.permute.xlu0 %1389
      %v1392 = vsel %vm710, %v1218, %v1390
      %v1393 = vpack.c.bf16 %v1392, %v1050
      %v1394 = vld [vmem:[%s593] sm:$0xf]
      %v1395 = vld [vmem:[%s593 + $0x4] sm:$0xf]
      %v1396 = vld [vmem:[%s593 + $0x8] sm:$0xf]
      %v1397 = vld [vmem:[%s593 + $0xc] sm:$0xf]
      %v1398 = vld [vmem:[%s596] sm:$0x1]
      %v1400 = vlaneseq
      %v1401 = vshrl.u32 %v1400, 7
      %v1402 = vsub.s32 0, %v1401
      %v1403 = vrot.slane %v1398, %v1402
      %v1409 = vunpack.c.l.b16 %v1394
      %v1410 = vunpack.c.l.b16 %v1395
      %v1411 = vunpack.c.l.b16 %v1396
      %v1412 = vunpack.c.l.b16 %v1397
      %v1413 = vpack.c.b16 %v1410, %v1409
      %v1414 = vpack.c.b16 %v1412, %v1411
      %v1418 = vsel %vm662, %v1393, 0
      %1420 = vmatprep.subr.bf16.mxu0 0
      %1421 = vmatpush1.bf16.msra.mxu0 %v1413
      %1422 = vmatprep.subr.bf16.mxu0 0
      %1423 = vmatpush1.bf16.msra.mxu0 %v1414
      %1424 = vmatprep.subr.bf16.mxu0 0
      %1425 = vmatpush1.bf16.msra.mxu0 0
      %1426 = vmatprep.subr.bf16.mxu0 0
      %1427 = vmatpush1.bf16.msra.mxu0 0
      %1428 = vmatprep.subr.bf16.mxu0 0
      %1429 = vmatpush1.bf16.msra.mxu0 0
      %1430 = vmatprep.subr.bf16.mxu0 0
      %1431 = vmatpush1.bf16.msra.mxu0 0
      %1432 = vmatprep.subr.bf16.mxu0 0
      %1433 = vmatpush1.bf16.msra.mxu0 0
      %1434 = vmatprep.subr.bf16.mxu0 0
      %1435 = vmatpush1.bf16.msra.mxu0 0
      %1436 = vmatprep.subr.bf16.mxu0 0
      %1437 = vmatpush1.bf16.msra.mxu0 0
      %1438 = vmatprep.subr.bf16.mxu0 0
      %1439 = vmatpush1.bf16.msra.mxu0 0
      %1440 = vmatprep.subr.bf16.mxu0 0
      %1441 = vmatpush1.bf16.msra.mxu0 0
      %1442 = vmatprep.subr.bf16.mxu0 0
      %1443 = vmatpush1.bf16.msra.mxu0 0
      %1444 = vmatprep.subr.bf16.mxu0 0
      %1445 = vmatpush1.bf16.msra.mxu0 0
      %1446 = vmatprep.subr.bf16.mxu0 0
      %1447 = vmatpush1.bf16.msra.mxu0 0
      %1448 = vmatprep.subr.bf16.mxu0 0
      %1449 = vmatpush1.bf16.msra.mxu0 0
      %1450 = vmatprep.subr.bf16.mxu0 0
      %1451 = vmatpush1.bf16.msra.mxu0 0
      %1452 = vmatprep.mubr.bf16.mxu0 0
      %1453 = vmatmul.mubr.bf16.gmra.mrb[0].mxu0 %v1418
      %v1454 = vpop.f32.mrb[0].mxu0
      %v1455 = vadd.f32 %v1403, %v1454
      %v1456 = vpop.f32.mrb[0].mxu0
      %v1457 = vpop.f32.mrb[0].mxu0
      %v1458 = vadd.f32 %v1403, %v1457
      %v1459 = vpop.f32.mrb[0].mxu0
      %1460 = vdwg.mxu0
      %v1461 = vadd.f32 %v1455, %v635
      %v1462 = vadd.f32 %v1458, %v636
      %v1463 = vld [vmem:[%s599] sm:$0x1]
      %v1464 = vld [vmem:[%s602] sm:$0x1]
      %v1465 = vsel %vm662, %v1461, 0.0
      %1466 = vadd.xlane.f32.xlu0 %v1465
      %v1467 = vpop.xlane.xlu0 %1466
      %v1468 = vsel %vm662, %v1462, 0.0
      %1469 = vadd.xlane.f32.xlu0 %v1468
      %v1470 = vpop.xlane.xlu0 %1469
      %v1471 = vrcp.pop 32.0
      %v1472 = vmul.f32 %v1467, %v1471
      %v1473 = vmul.f32 %v1470, %v1471
      %v1474 = vsub.f32 %v1461, %v1472
      %v1475 = vsub.f32 %v1462, %v1473
      %v1476 = vmul.f32 %v1474, %v1474
      %v1477 = vmul.f32 %v1475, %v1475
      %v1478 = vsel %vm662, %v1476, 0.0
      %1479 = vadd.xlane.f32.xlu0 %v1478
      %v1480 = vpop.xlane.xlu0 %1479
      %v1481 = vsel %vm662, %v1477, 0.0
      %1482 = vadd.xlane.f32.xlu0 %v1481
      %v1483 = vpop.xlane.xlu0 %1482
      %v1484 = vmul.f32 %v1480, %v1471
      %v1485 = vmul.f32 %v1483, %v1471
      %v1486 = vadd.f32 %v1484, 1e-12
      %v1487 = vadd.f32 %v1485, 1e-12
      %v1488 = vrsqrt.pop %v1486
      %v1489 = vrsqrt.pop %v1487
      %v1490 = vmul.f32 %v1474, %v1488
      %v1491 = vmul.f32 %v1475, %v1489
      %v1493 = vlaneseq
      %v1494 = vshrl.u32 %v1493, 7
      %v1495 = vsub.s32 0, %v1494
      %v1496 = vrot.slane %v1463, %v1495
      %v1498 = vmul.f32 %v1490, %v1496
      %v1499 = vmul.f32 %v1491, %v1496
      %v1501 = vlaneseq
      %v1502 = vshrl.u32 %v1501, 7
      %v1503 = vsub.s32 0, %v1502
      %v1504 = vrot.slane %v1464, %v1503
      %v1506 = vadd.f32 %v1498, %v1504
      %v1507 = vadd.f32 %v1499, %v1504
      %v1508 = vpack.c.bf16 %v1507, %v1506
      %v1509 = vld [vmem:[%s607] sm:$0xf]
      %v1510 = vld [vmem:[%s607 + $0x4] sm:$0xf]
      %v1511 = vld [vmem:[%s607 + $0x8] sm:$0xf]
      %v1512 = vld [vmem:[%s607 + $0xc] sm:$0xf]
      %v1513 = vld [vmem:[%s610] sm:$0x1]
      %v1515 = vlaneseq
      %v1516 = vshrl.u32 %v1515, 7
      %v1517 = vsub.s32 0, %v1516
      %v1518 = vrot.slane %v1513, %v1517
      %v1524 = vunpack.c.l.b16 %v1509
      %v1525 = vunpack.c.l.b16 %v1510
      %v1526 = vunpack.c.l.b16 %v1511
      %v1527 = vunpack.c.l.b16 %v1512
      %v1528 = vpack.c.b16 %v1525, %v1524
      %v1529 = vpack.c.b16 %v1527, %v1526
      %v1533 = vsel %vm662, %v1508, 0
      %1535 = vmatprep.subr.bf16.mxu0 0
      %1536 = vmatpush1.bf16.msra.mxu0 %v1528
      %1537 = vmatprep.subr.bf16.mxu0 0
      %1538 = vmatpush1.bf16.msra.mxu0 %v1529
      %1539 = vmatprep.subr.bf16.mxu0 0
      %1540 = vmatpush1.bf16.msra.mxu0 0
      %1541 = vmatprep.subr.bf16.mxu0 0
      %1542 = vmatpush1.bf16.msra.mxu0 0
      %1543 = vmatprep.subr.bf16.mxu0 0
      %1544 = vmatpush1.bf16.msra.mxu0 0
      %1545 = vmatprep.subr.bf16.mxu0 0
      %1546 = vmatpush1.bf16.msra.mxu0 0
      %1547 = vmatprep.subr.bf16.mxu0 0
      %1548 = vmatpush1.bf16.msra.mxu0 0
      %1549 = vmatprep.subr.bf16.mxu0 0
      %1550 = vmatpush1.bf16.msra.mxu0 0
      %1551 = vmatprep.subr.bf16.mxu0 0
      %1552 = vmatpush1.bf16.msra.mxu0 0
      %1553 = vmatprep.subr.bf16.mxu0 0
      %1554 = vmatpush1.bf16.msra.mxu0 0
      %1555 = vmatprep.subr.bf16.mxu0 0
      %1556 = vmatpush1.bf16.msra.mxu0 0
      %1557 = vmatprep.subr.bf16.mxu0 0
      %1558 = vmatpush1.bf16.msra.mxu0 0
      %1559 = vmatprep.subr.bf16.mxu0 0
      %1560 = vmatpush1.bf16.msra.mxu0 0
      %1561 = vmatprep.subr.bf16.mxu0 0
      %1562 = vmatpush1.bf16.msra.mxu0 0
      %1563 = vmatprep.subr.bf16.mxu0 0
      %1564 = vmatpush1.bf16.msra.mxu0 0
      %1565 = vmatprep.subr.bf16.mxu0 0
      %1566 = vmatpush1.bf16.msra.mxu0 0
      %1567 = vmatprep.mubr.bf16.mxu0 0
      %1568 = vmatmul.mubr.bf16.gmra.mrb[0].mxu0 %v1533
      %v1569 = vpop.f32.mrb[0].mxu0
      %v1570 = vadd.f32 %v1518, %v1569
      %v1571 = vpop.f32.mrb[0].mxu0
      %v1572 = vpop.f32.mrb[0].mxu0
      %v1573 = vadd.f32 %v1518, %v1572
      %v1574 = vpop.f32.mrb[0].mxu0
      %1575 = vdwg.mxu0
      %v1576 = vmul.f32 %v1570, 0.5
      %v1577 = vmul.f32 %v1573, 0.5
      %v1578 = vmul.f32 %v1570, 0.044715
      %v1579 = vmul.f32 %v1573, 0.044715
      %v1580 = vmul.f32 %v1578, %v1570
      %v1581 = vmul.f32 %v1579, %v1573
      %v1582 = vmul.f32 %v1580, %v1570
      %v1583 = vmul.f32 %v1581, %v1573
      %v1584 = vadd.f32 %v1570, %v1582
      %v1585 = vadd.f32 %v1573, %v1583
      %v1586 = vmul.f32 %v1584, 0.7978846
      %v1587 = vmul.f32 %v1585, 0.7978846
      %v1588 = vtanh.pop %v1586
      %v1589 = vtanh.pop %v1587
      %v1590 = vadd.f32 %v1588, 1.0
      %v1591 = vadd.f32 %v1589, 1.0
      %v1592 = vmul.f32 %v1576, %v1590
      %v1593 = vmul.f32 %v1577, %v1591
      %v1594 = vpack.c.bf16 %v1593, %v1592
      %v1595 = vld [vmem:[%s615] sm:$0xf]
      %v1596 = vld [vmem:[%s615 + $0x4] sm:$0xf]
      %v1597 = vld [vmem:[%s615 + $0x8] sm:$0xf]
      %v1598 = vld [vmem:[%s615 + $0xc] sm:$0xf]
      %v1599 = vld [vmem:[%s615 + $0x10] sm:$0xf]
      %v1600 = vld [vmem:[%s615 + $0x14] sm:$0xf]
      %v1601 = vld [vmem:[%s615 + $0x18] sm:$0xf]
      %v1602 = vld [vmem:[%s615 + $0x1c] sm:$0xf]
      %v1603 = vld [vmem:[%s618] sm:$0x1]
      %v1605 = vlaneseq
      %v1606 = vshrl.u32 %v1605, 7
      %v1607 = vsub.s32 0, %v1606
      %v1608 = vrot.slane %v1603, %v1607
      %v1618 = vunpack.c.l.b16 %v1595
      %v1619 = vunpack.c.l.b16 %v1596
      %v1620 = vunpack.c.l.b16 %v1597
      %v1621 = vunpack.c.l.b16 %v1598
      %v1622 = vunpack.c.l.b16 %v1599
      %v1623 = vunpack.c.l.b16 %v1600
      %v1624 = vunpack.c.l.b16 %v1601
      %v1625 = vunpack.c.l.b16 %v1602
      %v1626 = vpack.c.b16 %v1619, %v1618
      %v1627 = vpack.c.b16 %v1621, %v1620
      %v1628 = vpack.c.b16 %v1623, %v1622
      %v1629 = vpack.c.b16 %v1625, %v1624
      %vm1634 = vcmask 523264
      %v1636 = vsel %vm1634, %v1594, 0
      %1638 = vmatprep.subr.bf16.mxu0 0
      %1639 = vmatpush1.bf16.msra.mxu0 %v1626
      %1640 = vmatprep.subr.bf16.mxu0 0
      %1641 = vmatpush1.bf16.msra.mxu0 %v1627
      %1642 = vmatprep.subr.bf16.mxu0 0
      %1643 = vmatpush1.bf16.msra.mxu0 %v1628
      %1644 = vmatprep.subr.bf16.mxu0 0
      %1645 = vmatpush1.bf16.msra.mxu0 %v1629
      %1646 = vmatprep.subr.bf16.mxu0 0
      %1647 = vmatpush1.bf16.msra.mxu0 0
      %1648 = vmatprep.subr.bf16.mxu0 0
      %1649 = vmatpush1.bf16.msra.mxu0 0
      %1650 = vmatprep.subr.bf16.mxu0 0
      %1651 = vmatpush1.bf16.msra.mxu0 0
      %1652 = vmatprep.subr.bf16.mxu0 0
      %1653 = vmatpush1.bf16.msra.mxu0 0
      %1654 = vmatprep.subr.bf16.mxu0 0
      %1655 = vmatpush1.bf16.msra.mxu0 0
      %1656 = vmatprep.subr.bf16.mxu0 0
      %1657 = vmatpush1.bf16.msra.mxu0 0
      %1658 = vmatprep.subr.bf16.mxu0 0
      %1659 = vmatpush1.bf16.msra.mxu0 0
      %1660 = vmatprep.subr.bf16.mxu0 0
      %1661 = vmatpush1.bf16.msra.mxu0 0
      %1662 = vmatprep.subr.bf16.mxu0 0
      %1663 = vmatpush1.bf16.msra.mxu0 0
      %1664 = vmatprep.subr.bf16.mxu0 0
      %1665 = vmatpush1.bf16.msra.mxu0 0
      %1666 = vmatprep.subr.bf16.mxu0 0
      %1667 = vmatpush1.bf16.msra.mxu0 0
      %1668 = vmatprep.subr.bf16.mxu0 0
      %1669 = vmatpush1.bf16.msra.mxu0 0
      %1670 = vmatprep.mubr.bf16.mxu0 0
      %1671 = vmatmul.mubr.bf16.gmra.mrb[0].mxu0 %v1636
      %v1672 = vpop.f32.mrb[0].mxu0
      %v1673 = vadd.f32 %v1608, %v1672
      %v1674 = vpop.f32.mrb[0].mxu0
      %v1675 = vpop.f32.mrb[0].mxu0
      %v1676 = vadd.f32 %v1608, %v1675
      %v1677 = vpop.f32.mrb[0].mxu0
      %1678 = vdwg.mxu0
      %v1679 = vadd.f32 %v1673, %v1506
      %v1680 = vadd.f32 %v1676, %v1507
      %v1681 = vld [vmem:[%s621] sm:$0x1]
      %v1682 = vld [vmem:[%s624] sm:$0x1]
      %v1683 = vsel %vm662, %v1679, 0.0
      %1684 = vadd.xlane.f32.xlu0 %v1683
      %v1685 = vpop.xlane.xlu0 %1684
      %v1686 = vsel %vm662, %v1680, 0.0
      %1687 = vadd.xlane.f32.xlu0 %v1686
      %v1688 = vpop.xlane.xlu0 %1687
      %v1689 = vmul.f32 %v1685, %v1471
      %v1690 = vmul.f32 %v1688, %v1471
      %v1691 = vsub.f32 %v1679, %v1689
      %v1692 = vsub.f32 %v1680, %v1690
      %v1693 = vmul.f32 %v1691, %v1691
      %v1694 = vmul.f32 %v1692, %v1692
      %v1695 = vsel %vm662, %v1693, 0.0
      %1696 = vadd.xlane.f32.xlu0 %v1695
      %v1697 = vpop.xlane.xlu0 %1696
      %v1698 = vsel %vm662, %v1694, 0.0
      %1699 = vadd.xlane.f32.xlu0 %v1698
      %v1700 = vpop.xlane.xlu0 %1699
      %v1701 = vmul.f32 %v1697, %v1471
      %v1702 = vmul.f32 %v1700, %v1471
      %v1703 = vadd.f32 %v1701, 1e-12
      %v1704 = vadd.f32 %v1702, 1e-12
      %v1705 = vrsqrt.pop %v1703
      %v1706 = vrsqrt.pop %v1704
      %v1707 = vmul.f32 %v1691, %v1705
      %v1708 = vmul.f32 %v1692, %v1706
      %v1710 = vlaneseq
      %v1711 = vshrl.u32 %v1710, 7
      %v1712 = vsub.s32 0, %v1711
      %v1713 = vrot.slane %v1681, %v1712
      %v1715 = vmul.f32 %v1707, %v1713
      %v1716 = vmul.f32 %v1708, %v1713
      %v1718 = vlaneseq
      %v1719 = vshrl.u32 %v1718, 7
      %v1720 = vsub.s32 0, %v1719
      %v1721 = vrot.slane %v1682, %v1720
      %v1723 = vadd.f32 %v1715, %v1721
      %v1724 = vadd.f32 %v1716, %v1721
      %1725 = vst.msk [vmem:[%s14] sm:$0xff] %vm662, %v1723
      %1726 = vst.msk [vmem:[%s14 + $0x8] sm:$0xff] %vm662, %v1724
      // Predicated region
      $region81: #{bert_classifier_forward.4} parent=75 // pred_check
        %p1727 = pneg %p392
      $region82: #{bert_classifier_forward.4} parent=75 // pred_check_branch
        %1729 = sbr.rel (%p1727) target = $region84
      $region83: #{bert_classifier_forward.4} parent=75 // pred_region
        _
      $region84: #{bert_classifier_forward.4} parent=75 // pred_fallthru
        _
      // Predicated region
      $region85: #{bert_classifier_forward.4} parent=75 // pred_check
        %p1730 = pneg %p392
      $region86: #{bert_classifier_forward.4} parent=75 // pred_check_branch
        %1732 = sbr.rel (%p1730) target = $region88
      $region87: #{bert_classifier_forward.4} parent=75 // pred_region
        _
      $region88: #{bert_classifier_forward.4} parent=75 // pred_fallthru
        _
    $region76: #{bert_classifier_forward.4} parent=5 // pred_fallthru
      _
    %p1733 = scmp.le.s32.totalorder 2, %s20
    // Predicated region
    $region89: #{bert_classifier_forward.4} parent=5 // pred_check
      %p1734 = pneg %p1733
    $region90: #{bert_classifier_forward.4} parent=5 // pred_check_branch
      %1736 = sbr.rel (%p1734) target = $region92
    $region91: #{bert_classifier_forward.4} parent=5 // pred_region
      %s1737 = ssub.s32 %s20, 2
    $region92: #{bert_classifier_forward.4} parent=5 // pred_fallthru
      _
  $region6: #{bert_classifier_forward.4} parent=0 // loop_footer
    %s24 = sadd.s32 1, %s20
  $region7: #{bert_classifier_forward.4} parent=0 // loop_footer_branch
    %19 = sbr.rel target = $region3
  $region8: #{bert_classifier_forward.4} parent=0 // loop_exit
    _

</llo_original>
